<compile_context>
chip_gen: v7x
topology: tpu7x:2x2x1
jax: 0.10.0
libtpu: 0.0.40
codegen_flags: <defaults>
</compile_context>

<pallas_src>
import jax
import jax.numpy as jnp
from jax.experimental import pallas as pl
from jax.experimental.pallas import tpu as pltpu

IN_DIM = 784
HID = 256
OUT_DIM = 10
OUT_PAD = 128      # lane-dense output width
NEG_BIG = -1e30    # bias for padded classes -> exp() == 0 in log_softmax


def _round_up(x, m):
    return ((x + m - 1) // m) * m


def mlp_kernel(x_ref, w1_ref, b1_ref, w2_ref, b2_ref, w3_ref, b3_ref, o_ref):
    # x arrives as f32 straight from HBM; cast to bf16 in-register for the MXU.
    x = x_ref[...].astype(jnp.bfloat16)                       # (bt, 784)
    # fc1 + relu   (bf16 MXU inputs, f32 accumulate, f32 elementwise)
    h1 = jnp.dot(x, w1_ref[...], preferred_element_type=jnp.float32) + b1_ref[...]
    h1 = jnp.maximum(h1, 0.0).astype(jnp.bfloat16)
    # fc2 + relu
    h2 = jnp.dot(h1, w2_ref[...], preferred_element_type=jnp.float32) + b2_ref[...]
    h2 = jnp.maximum(h2, 0.0).astype(jnp.bfloat16)
    # fc3 (class dim padded to 128; padded columns carry a -1e30 bias in f32)
    logits = jnp.dot(h2, w3_ref[...], preferred_element_type=jnp.float32) + b3_ref[...]
    # log_softmax over the feature axis (padded classes contribute exp(-huge)=0)
    m = jnp.max(logits, axis=-1, keepdims=True)
    shifted = logits - m
    lse = jnp.log(jnp.sum(jnp.exp(shifted), axis=-1, keepdims=True))
    o_ref[...] = (shifted - lse).astype(o_ref.dtype)


def _pick_tiling(B, batch_tile):
    """Pad batch to a multiple of 16 and pick a tile that (a) is a multiple of 16,
    (b) is capped so the grid has >= 2 steps when the batch allows it (v7x has
    two TensorCores sharing the parallel grid axis)."""
    Bp = _round_up(B, 16)
    bt = min(batch_tile, _round_up(pl.cdiv(Bp, 2), 16))
    bt = max(bt, 16)
    Bp = _round_up(Bp, bt)
    return Bp, bt


def mnist_forward(x, w1, b1, w2, b2, w3, b3, *, batch_tile=1024,
                  out_dtype=jnp.bfloat16):
    """x: (B, 784) f32. Weights pre-transposed: w1 (784,256), w2 (256,256), w3 (256,10).
    Returns (B, 10) log-probabilities in `out_dtype` (bf16 by default to halve
    output HBM writeback; pass jnp.float32 for full-precision output)."""
    B = x.shape[0]
    Bp, bt = _pick_tiling(B, batch_tile)

    # x is fed to the kernel as-is (f32, K=784); only pad batch rows if needed.
    x_in = x if Bp == B else jnp.pad(x, ((0, Bp - B), (0, 0)))

    # Small, one-off host-side prep of the (tiny, resident) weights/biases.
    w1p = w1.astype(jnp.bfloat16)                                   # (784, 256)
    w2p = w2.astype(jnp.bfloat16)                                   # (256, 256)
    w3p = jnp.pad(w3, ((0, 0), (0, OUT_PAD - OUT_DIM))).astype(jnp.bfloat16)
    b1p = b1.astype(jnp.float32)
    b2p = b2.astype(jnp.float32)
    b3p = jnp.pad(b3.astype(jnp.float32), ((0, 0), (0, OUT_PAD - OUT_DIM)),
                  constant_values=NEG_BIG)

    fixed = lambda i: (0, 0)  # weights/biases fully resident in VMEM

    out = pl.pallas_call(
        mlp_kernel,
        out_shape=jax.ShapeDtypeStruct((Bp, OUT_PAD), out_dtype),
        grid_spec=pl.GridSpec(
            grid=(Bp // bt,),
            in_specs=[
                pl.BlockSpec((bt, IN_DIM), lambda i: (i, 0)),   # x tile (f32, K=784)
                pl.BlockSpec((IN_DIM, HID), fixed),             # w1
                pl.BlockSpec((1, HID), fixed),                  # b1
                pl.BlockSpec((HID, HID), fixed),                # w2
                pl.BlockSpec((1, HID), fixed),                  # b2
                pl.BlockSpec((HID, OUT_PAD), fixed),            # w3 (padded cols)
                pl.BlockSpec((1, OUT_PAD), fixed),              # b3 (padded = -1e30)
            ],
            out_specs=pl.BlockSpec((bt, OUT_PAD), lambda i: (i, 0)),
        ),
        compiler_params=pltpu.CompilerParams(
            dimension_semantics=("parallel",),        # batch tiles split across TCs
            vmem_limit_bytes=32 * 1024 * 1024,        # safe on v5e (16 MiB default)
        ),
    )(x_in, w1p, b1p, w2p, b2p, w3p, b3p)

    # Slice away batch padding and the 118 padded class columns.  Downstream
    # losses (e.g. NLL gather) may instead consume the padded (Bp, 128) tensor
    # directly to skip this tiny slice pass.
    return out[:B, :OUT_DIM]


def init_params(key):
    # Shapes match nn.Linear(784,256), (256,256), (256,10); stored pre-transposed
    # as (in_features, out_features).
    k1, k2, k3, k4, k5, k6 = jax.random.split(key, 6)
    w1 = jax.random.normal(k1, (IN_DIM, HID), jnp.float32) * 0.02
    b1 = jax.random.normal(k2, (1, HID), jnp.float32) * 0.02
    w2 = jax.random.normal(k3, (HID, HID), jnp.float32) * 0.02
    b2 = jax.random.normal(k4, (1, HID), jnp.float32) * 0.02
    w3 = jax.random.normal(k5, (HID, OUT_DIM), jnp.float32) * 0.02
    b3 = jax.random.normal(k6, (1, OUT_DIM), jnp.float32) * 0.02
    return w1, b1, w2, b2, w3, b3


def reference_forward(x, w1, b1, w2, b2, w3, b3):
    # Mirrors the kernel's bf16-in / f32-accumulate matmuls so tolerances stay tight.
    bf16, f32 = jnp.bfloat16, jnp.float32
    h1 = jnp.maximum(
        jnp.dot(x.astype(bf16), w1.astype(bf16), preferred_element_type=f32) + b1, 0.0)
    h2 = jnp.maximum(
        jnp.dot(h1.astype(bf16), w2.astype(bf16), preferred_element_type=f32) + b2, 0.0)
    logits = jnp.dot(h2.astype(bf16), w3.astype(bf16), preferred_element_type=f32) + b3
    return jax.nn.log_softmax(logits, axis=1)


if __name__ == "__main__":
    key = jax.random.PRNGKey(0)
    kx, kp = jax.random.split(key)
    B = 32  # small demo batch: picks bt=16, grid of 2 steps, no batch padding
    x = jax.random.normal(kx, (B, IN_DIM), jnp.float32)
    params = init_params(kp)

    out = mnist_forward(x, *params)
    out = jax.block_until_ready(out)

    ref = reference_forward(x, *params)
    assert out.shape == (B, OUT_DIM)
    # Output is bf16 log-probs (values ~O(-2.5)); bf16 rounding gives ~1e-2 abs error.
    assert jnp.allclose(out.astype(jnp.float32), ref, atol=3e-2, rtol=2e-2)
    print("KERNEL_OK")
</pallas_src>

<mosaic_0001>
module attributes {stable_mosaic.version = 11 : i64} {
  func.func @mlp_kernel(%arg0: i32, %arg1: memref<16x784xf32, #tpu.memory_space<vmem>>, %arg2: memref<784x256xbf16, #tpu.memory_space<vmem>>, %arg3: memref<1x256xf32, #tpu.memory_space<vmem>>, %arg4: memref<256x256xbf16, #tpu.memory_space<vmem>>, %arg5: memref<1x256xf32, #tpu.memory_space<vmem>>, %arg6: memref<256x128xbf16, #tpu.memory_space<vmem>>, %arg7: memref<1x128xf32, #tpu.memory_space<vmem>>, %arg8: memref<16x128xbf16, #tpu.memory_space<vmem>>) attributes {dimension_semantics = [#tpu.dimension_semantics<parallel>], iteration_bounds = array<i64: 2>, scalar_prefetch = 0 : i64, scratch_operands = 0 : i64, tpu.core_type = #tpu.core_type<tc>, window_params = [{transform_indices = @transform_0, window_bounds = array<i64: 16, 784>}, {pipeline_mode = #tpu.pipeline_mode<synchronous>, transform_indices = @transform_1, window_bounds = array<i64: 784, 256>}, {pipeline_mode = #tpu.pipeline_mode<synchronous>, transform_indices = @transform_2, window_bounds = array<i64: 1, 256>}, {pipeline_mode = #tpu.pipeline_mode<synchronous>, transform_indices = @transform_3, window_bounds = array<i64: 256, 256>}, {pipeline_mode = #tpu.pipeline_mode<synchronous>, transform_indices = @transform_4, window_bounds = array<i64: 1, 256>}, {pipeline_mode = #tpu.pipeline_mode<synchronous>, transform_indices = @transform_5, window_bounds = array<i64: 256, 128>}, {pipeline_mode = #tpu.pipeline_mode<synchronous>, transform_indices = @transform_6, window_bounds = array<i64: 1, 128>}, {transform_indices = @transform_7, window_bounds = array<i64: 16, 128>}]} {
    %c0 = arith.constant 0 : index
    %c0_0 = arith.constant 0 : index
    %0 = vector.load %arg1[%c0, %c0_0] : memref<16x784xf32, #tpu.memory_space<vmem>>, vector<16x784xf32>
    %1 = arith.truncf %0 : vector<16x784xf32> to vector<16x784xbf16>
    %c0_1 = arith.constant 0 : index
    %c0_2 = arith.constant 0 : index
    %2 = vector.load %arg2[%c0_1, %c0_2] : memref<784x256xbf16, #tpu.memory_space<vmem>>, vector<784x256xbf16>
    %cst = arith.constant dense<0.000000e+00> : vector<16x256xf32>
    %3 = tpu.matmul %1, %2, %cst {dimension_numbers = #tpu.dot_dimension_numbers<[1], [0], [0], [1], [0, 0, 1, 1], [], []>} : vector<16x784xbf16>, vector<784x256xbf16>, vector<16x256xf32> -> vector<16x256xf32>
    %c0_3 = arith.constant 0 : index
    %c0_4 = arith.constant 0 : index
    %4 = vector.load %arg3[%c0_3, %c0_4] : memref<1x256xf32, #tpu.memory_space<vmem>>, vector<1x256xf32>
    %5 = vector.broadcast %4 : vector<1x256xf32> to vector<16x256xf32>
    %6 = arith.addf %3, %5 : vector<16x256xf32>
    %cst_5 = arith.constant 0.000000e+00 : f32
    %7 = vector.broadcast %cst_5 : f32 to vector<16x256xf32>
    %8 = arith.maximumf %6, %7 : vector<16x256xf32>
    %9 = arith.truncf %8 : vector<16x256xf32> to vector<16x256xbf16>
    %c0_6 = arith.constant 0 : index
    %c0_7 = arith.constant 0 : index
    %10 = vector.load %arg4[%c0_6, %c0_7] : memref<256x256xbf16, #tpu.memory_space<vmem>>, vector<256x256xbf16>
    %cst_8 = arith.constant dense<0.000000e+00> : vector<16x256xf32>
    %11 = tpu.matmul %9, %10, %cst_8 {dimension_numbers = #tpu.dot_dimension_numbers<[1], [0], [0], [1], [0, 0, 1, 1], [], []>} : vector<16x256xbf16>, vector<256x256xbf16>, vector<16x256xf32> -> vector<16x256xf32>
    %c0_9 = arith.constant 0 : index
    %c0_10 = arith.constant 0 : index
    %12 = vector.load %arg5[%c0_9, %c0_10] : memref<1x256xf32, #tpu.memory_space<vmem>>, vector<1x256xf32>
    %13 = vector.broadcast %12 : vector<1x256xf32> to vector<16x256xf32>
    %14 = arith.addf %11, %13 : vector<16x256xf32>
    %cst_11 = arith.constant 0.000000e+00 : f32
    %15 = vector.broadcast %cst_11 : f32 to vector<16x256xf32>
    %16 = arith.maximumf %14, %15 : vector<16x256xf32>
    %17 = arith.truncf %16 : vector<16x256xf32> to vector<16x256xbf16>
    %c0_12 = arith.constant 0 : index
    %c0_13 = arith.constant 0 : index
    %18 = vector.load %arg6[%c0_12, %c0_13] : memref<256x128xbf16, #tpu.memory_space<vmem>>, vector<256x128xbf16>
    %cst_14 = arith.constant dense<0.000000e+00> : vector<16x128xf32>
    %19 = tpu.matmul %17, %18, %cst_14 {dimension_numbers = #tpu.dot_dimension_numbers<[1], [0], [0], [1], [0, 0, 1, 1], [], []>} : vector<16x256xbf16>, vector<256x128xbf16>, vector<16x128xf32> -> vector<16x128xf32>
    %c0_15 = arith.constant 0 : index
    %c0_16 = arith.constant 0 : index
    %20 = vector.load %arg7[%c0_15, %c0_16] : memref<1x128xf32, #tpu.memory_space<vmem>>, vector<1x128xf32>
    %21 = vector.broadcast %20 : vector<1x128xf32> to vector<16x128xf32>
    %22 = arith.addf %19, %21 : vector<16x128xf32>
    %cst_17 = arith.constant dense<0xFF800000> : vector<16xf32>
    %23 = vector.multi_reduction <maximumf>, %22, %cst_17 [1] : vector<16x128xf32> to vector<16xf32>
    %24 = vector.shape_cast %23 : vector<16xf32> to vector<16x1xf32>
    %25 = vector.broadcast %24 : vector<16x1xf32> to vector<16x128xf32>
    %26 = arith.subf %22, %25 : vector<16x128xf32>
    %27 = math.exp %26 : vector<16x128xf32>
    %cst_18 = arith.constant dense<0.000000e+00> : vector<16xf32>
    %28 = vector.multi_reduction <add>, %27, %cst_18 [1] : vector<16x128xf32> to vector<16xf32>
    %29 = vector.shape_cast %28 : vector<16xf32> to vector<16x1xf32>
    %30 = math.log %29 : vector<16x1xf32>
    %31 = vector.broadcast %30 : vector<16x1xf32> to vector<16x128xf32>
    %32 = arith.subf %26, %31 : vector<16x128xf32>
    %33 = arith.truncf %32 : vector<16x128xf32> to vector<16x128xbf16>
    %c0_19 = arith.constant 0 : index
    %c0_20 = arith.constant 0 : index
    %34 = vector.load %arg8[%c0_19, %c0_20] : memref<16x128xbf16, #tpu.memory_space<vmem>>, vector<16x128xbf16>
    tpu.vector_store %arg8[%c0_19, %c0_20], %33 {strides = array<i32>} : memref<16x128xbf16, #tpu.memory_space<vmem>>, vector<16x128xbf16>,
    return
  }
  func.func @transform_0(%arg0: i32) -> (i32, i32) {
    %c0_i32 = arith.constant 0 : i32
    %c0_i32_0 = arith.constant 0 : i32
    return %arg0, %c0_i32 : i32, i32
  }
  func.func @transform_1(%arg0: i32) -> (i32, i32) {
    %c0_i32 = arith.constant 0 : i32
    %c0_i32_0 = arith.constant 0 : i32
    %c0_i32_1 = arith.constant 0 : i32
    return %c0_i32, %c0_i32_0 : i32, i32
  }
  func.func @transform_2(%arg0: i32) -> (i32, i32) {
    %c0_i32 = arith.constant 0 : i32
    %c0_i32_0 = arith.constant 0 : i32
    %c0_i32_1 = arith.constant 0 : i32
    return %c0_i32, %c0_i32_0 : i32, i32
  }
  func.func @transform_3(%arg0: i32) -> (i32, i32) {
    %c0_i32 = arith.constant 0 : i32
    %c0_i32_0 = arith.constant 0 : i32
    %c0_i32_1 = arith.constant 0 : i32
    return %c0_i32, %c0_i32_0 : i32, i32
  }
  func.func @transform_4(%arg0: i32) -> (i32, i32) {
    %c0_i32 = arith.constant 0 : i32
    %c0_i32_0 = arith.constant 0 : i32
    %c0_i32_1 = arith.constant 0 : i32
    return %c0_i32, %c0_i32_0 : i32, i32
  }
  func.func @transform_5(%arg0: i32) -> (i32, i32) {
    %c0_i32 = arith.constant 0 : i32
    %c0_i32_0 = arith.constant 0 : i32
    %c0_i32_1 = arith.constant 0 : i32
    return %c0_i32, %c0_i32_0 : i32, i32
  }
  func.func @transform_6(%arg0: i32) -> (i32, i32) {
    %c0_i32 = arith.constant 0 : i32
    %c0_i32_0 = arith.constant 0 : i32
    %c0_i32_1 = arith.constant 0 : i32
    return %c0_i32, %c0_i32_0 : i32, i32
  }
  func.func @transform_7(%arg0: i32) -> (i32, i32) {
    %c0_i32 = arith.constant 0 : i32
    %c0_i32_0 = arith.constant 0 : i32
    return %arg0, %c0_i32 : i32, i32
  }
}

</mosaic_0001>

<llo_original>
// kernel: tpu_custom_call.1
$region0: #{tpu_custom_call.1}
  #allocation0 [shape = 'u32[]', space=smem, size = 0x4, offset = 0x4, fixed_abs, tag = 'smem constant byte address 0x4 - core index']
  #allocation1 [shape = 'u32[144,128]{1,0:T(1,128)}', space=vmem, size = 0x12000, scoped, tag = 'internal scratch']
  %s0 = inlined_call_operand.hbm [shape: f32[32,784], index: 0, kind: input, shape index: {}]
  %s1 = inlined_call_operand.hbm [shape: bf16[784,256], index: 1, kind: input, shape index: {}]
  %s2 = inlined_call_operand.vmem [shape: f32[1,256], index: 2, kind: input, shape index: {}]
  %s3 = inlined_call_operand.hbm [shape: bf16[256,256], index: 3, kind: input, shape index: {}]
  %s4 = inlined_call_operand.vmem [shape: f32[1,256], index: 4, kind: input, shape index: {}]
  %s5 = inlined_call_operand.hbm [shape: bf16[256,128], index: 5, kind: input, shape index: {}]
  %s6 = inlined_call_operand.vmem [shape: f32[1,128], index: 6, kind: input, shape index: {}]
  %s7 = inlined_call_operand.hbm [shape: bf16[32,128], index: 7, kind: output, shape index: {}]
  %s8 = sld [smem:[#allocation0]]
  $region77: #{tpu_custom_call.1} parent=0
    _
  %s10 = ssub.s32 1, %s8
  %s11 = scalar_select 0, %s10, %s8
  $region1: #{tpu_custom_call.1} parent=0
    #allocation2 [shape = 'u8[114688]{0}', space=vmem, size = 0x1c000, scoped, tag = 'input window, operand 0']
    #allocation3 [shape = 's32[2]{0}', space=sflag, size = 0x8, scoped, tag = 'scoped memory for tpu_custom_call.1']
    #allocation4 [shape = 's32[2]{0}', space=sflag, size = 0x8, scoped, tag = 'scoped memory for tpu_custom_call.1']
    #allocation5 [shape = 'u8[401408]{0}', space=vmem, size = 0x62000, scoped, tag = 'input window, operand 1, single buffered']
    #allocation6 [shape = 's32[1]{0}', space=sflag, size = 0x4, scoped, tag = 'scoped memory for tpu_custom_call.1']
    #allocation7 [shape = 'u8[131072]{0}', space=vmem, size = 0x20000, scoped, tag = 'input window, operand 3, single buffered']
    #allocation8 [shape = 'u8[65536]{0}', space=vmem, size = 0x10000, scoped, tag = 'input window, operand 5, single buffered']
    #allocation9 [shape = 's32[1]{0}', space=sflag, size = 0x4, scoped, tag = 'scoped memory for tpu_custom_call.1']
    #allocation10 [shape = 'u8[8192]{0}', space=vmem, size = 0x2000, scoped, tag = 'output window, operand 0']
    %12 = vsyncpa [#allocation3], 0
    %s13 = scalar_lea.sflag [#allocation3], 1
    %14 = vsyncpa %s13, 0
    %15 = vsyncpa [#allocation6], 0
    %16 = vsyncpa [#allocation9], 0
    %17 = vsyncpa [#allocation4], 0
    %s18 = scalar_lea.sflag [#allocation4], 1
    %19 = vsyncpa %s18, 0
    loop: start=0, step=1, limit=4
    $region2: #{tpu_custom_call.1} parent=1 // loop_pre_header
      _
    $region3: #{tpu_custom_call.1} parent=1 // loop_header
      %s21 = sphi 0, %s25
      %p22 = scmp.ge.s32.totalorder %s21, 4
      %s31 = sphi 0, %s33
      %s34 = sphi 0, %s31
      %s35 = sphi 0, %s34
      %s51 = sphi 0, %s35
      %s55 = sphi 0, %s55
      %s57 = sphi 0, %s55
      %s58 = sphi 0, %s57
      %s72 = sphi 0, %s58
      %s76 = sphi 0, %s76
      %s78 = sphi 0, %s76
      %s79 = sphi 0, %s78
      %s93 = sphi 0, %s79
      %s97 = sphi 0, %s97
      %s99 = sphi 0, %s97
      %s100 = sphi 0, %s99
      %s114 = sphi 0, %s100
      %s118 = sphi 0, %s118
      %s120 = sphi 0, %s118
      %s121 = sphi 0, %s120
      %s135 = sphi 0, %s121
      %s139 = sphi 0, %s139
      %s141 = sphi 0, %s139
      %s142 = sphi 0, %s141
      %s156 = sphi 0, %s142
      %s160 = sphi 0, %s160
      %s162 = sphi 0, %s160
      %s163 = sphi 0, %s162
      %s177 = sphi 0, %s163
      %s183 = sphi 0, %s185
      %s186 = sphi 0, %s183
      %s187 = sphi 0, %s186
      %s203 = sphi 0, %s187
    $region4: #{tpu_custom_call.1} parent=1 // loop_header_branch
      %24 = sbr.rel (%p22) target = $region8
    $region5: #{tpu_custom_call.1} parent=1 // loop_body
      %s26 = ssub.s32 %s21, 1
      %s27 = ssub.s32 %s21, 2
      %s28 = sadd.s32 %s21, 1
      %s29 = ssub.s32 %s21, %s28
      %p30 = scmp.eq.s32.totalorder %s29, 0
      %s32 = sadd.s32 %s31, 1
      %s33 = scalar_select %p30, %s31, %s32
      %p36 = pneg %p30
      %p37 = scmp.eq.s32.totalorder %s21, 1
      %p38 = por %p36, %p37
      %p39 = scmp.ne.s32.totalorder %s31, %s34
      %p40 = scmp.eq.s32.totalorder %s21, 0
      %p41 = por %p39, %p40
      %p42 = scmp.ne.s32.totalorder %s31, %s34
      %p43 = scmp.eq.s32.totalorder %s26, 1
      %p44 = por %p42, %p43
      %p45 = scmp.ne.s32.totalorder %s34, %s35
      %p46 = scmp.eq.s32.totalorder %s26, 0
      %p47 = por %p45, %p46
      %p48 = scmp.ne.s32.totalorder %s34, %s35
      %p49 = scmp.eq.s32.totalorder %s27, 1
      %p50 = por %p48, %p49
      %p52 = scmp.ne.s32.totalorder %s35, %s51
      %p53 = scmp.eq.s32.totalorder %s27, 0
      %p54 = por %p52, %p53
      %s56 = sadd.s32 %s55, 1
      %p59 = scmp.eq.s32.totalorder %s21, 1
      %p60 = scmp.ne.s32.totalorder %s55, %s57
      %p61 = scmp.eq.s32.totalorder %s21, 0
      %p62 = por %p60, %p61
      %p63 = scmp.ne.s32.totalorder %s55, %s57
      %p64 = scmp.eq.s32.totalorder %s26, 1
      %p65 = por %p63, %p64
      %p66 = scmp.ne.s32.totalorder %s57, %s58
      %p67 = scmp.eq.s32.totalorder %s26, 0
      %p68 = por %p66, %p67
      %p69 = scmp.ne.s32.totalorder %s57, %s58
      %p70 = scmp.eq.s32.totalorder %s27, 1
      %p71 = por %p69, %p70
      %p73 = scmp.ne.s32.totalorder %s58, %s72
      %p74 = scmp.eq.s32.totalorder %s27, 0
      %p75 = por %p73, %p74
      %s77 = sadd.s32 %s76, 1
      %p80 = scmp.eq.s32.totalorder %s21, 1
      %p81 = scmp.ne.s32.totalorder %s76, %s78
      %p82 = scmp.eq.s32.totalorder %s21, 0
      %p83 = por %p81, %p82
      %p84 = scmp.ne.s32.totalorder %s76, %s78
      %p85 = scmp.eq.s32.totalorder %s26, 1
      %p86 = por %p84, %p85
      %p87 = scmp.ne.s32.totalorder %s78, %s79
      %p88 = scmp.eq.s32.totalorder %s26, 0
      %p89 = por %p87, %p88
      %p90 = scmp.ne.s32.totalorder %s78, %s79
      %p91 = scmp.eq.s32.totalorder %s27, 1
      %p92 = por %p90, %p91
      %p94 = scmp.ne.s32.totalorder %s79, %s93
      %p95 = scmp.eq.s32.totalorder %s27, 0
      %p96 = por %p94, %p95
      %s98 = sadd.s32 %s97, 1
      %p101 = scmp.eq.s32.totalorder %s21, 1
      %p102 = scmp.ne.s32.totalorder %s97, %s99
      %p103 = scmp.eq.s32.totalorder %s21, 0
      %p104 = por %p102, %p103
      %p105 = scmp.ne.s32.totalorder %s97, %s99
      %p106 = scmp.eq.s32.totalorder %s26, 1
      %p107 = por %p105, %p106
      %p108 = scmp.ne.s32.totalorder %s99, %s100
      %p109 = scmp.eq.s32.totalorder %s26, 0
      %p110 = por %p108, %p109
      %p111 = scmp.ne.s32.totalorder %s99, %s100
      %p112 = scmp.eq.s32.totalorder %s27, 1
      %p113 = por %p111, %p112
      %p115 = scmp.ne.s32.totalorder %s100, %s114
      %p116 = scmp.eq.s32.totalorder %s27, 0
      %p117 = por %p115, %p116
      %s119 = sadd.s32 %s118, 1
      %p122 = scmp.eq.s32.totalorder %s21, 1
      %p123 = scmp.ne.s32.totalorder %s118, %s120
      %p124 = scmp.eq.s32.totalorder %s21, 0
      %p125 = por %p123, %p124
      %p126 = scmp.ne.s32.totalorder %s118, %s120
      %p127 = scmp.eq.s32.totalorder %s26, 1
      %p128 = por %p126, %p127
      %p129 = scmp.ne.s32.totalorder %s120, %s121
      %p130 = scmp.eq.s32.totalorder %s26, 0
      %p131 = por %p129, %p130
      %p132 = scmp.ne.s32.totalorder %s120, %s121
      %p133 = scmp.eq.s32.totalorder %s27, 1
      %p134 = por %p132, %p133
      %p136 = scmp.ne.s32.totalorder %s121, %s135
      %p137 = scmp.eq.s32.totalorder %s27, 0
      %p138 = por %p136, %p137
      %s140 = sadd.s32 %s139, 1
      %p143 = scmp.eq.s32.totalorder %s21, 1
      %p144 = scmp.ne.s32.totalorder %s139, %s141
      %p145 = scmp.eq.s32.totalorder %s21, 0
      %p146 = por %p144, %p145
      %p147 = scmp.ne.s32.totalorder %s139, %s141
      %p148 = scmp.eq.s32.totalorder %s26, 1
      %p149 = por %p147, %p148
      %p150 = scmp.ne.s32.totalorder %s141, %s142
      %p151 = scmp.eq.s32.totalorder %s26, 0
      %p152 = por %p150, %p151
      %p153 = scmp.ne.s32.totalorder %s141, %s142
      %p154 = scmp.eq.s32.totalorder %s27, 1
      %p155 = por %p153, %p154
      %p157 = scmp.ne.s32.totalorder %s142, %s156
      %p158 = scmp.eq.s32.totalorder %s27, 0
      %p159 = por %p157, %p158
      %s161 = sadd.s32 %s160, 1
      %p164 = scmp.eq.s32.totalorder %s21, 1
      %p165 = scmp.ne.s32.totalorder %s160, %s162
      %p166 = scmp.eq.s32.totalorder %s21, 0
      %p167 = por %p165, %p166
      %p168 = scmp.ne.s32.totalorder %s160, %s162
      %p169 = scmp.eq.s32.totalorder %s26, 1
      %p170 = por %p168, %p169
      %p171 = scmp.ne.s32.totalorder %s162, %s163
      %p172 = scmp.eq.s32.totalorder %s26, 0
      %p173 = por %p171, %p172
      %p174 = scmp.ne.s32.totalorder %s162, %s163
      %p175 = scmp.eq.s32.totalorder %s27, 1
      %p176 = por %p174, %p175
      %p178 = scmp.ne.s32.totalorder %s163, %s177
      %p179 = scmp.eq.s32.totalorder %s27, 0
      %p180 = por %p178, %p179
      %s181 = ssub.s32 %s21, %s28
      %p182 = scmp.eq.s32.totalorder %s181, 0
      %s184 = sadd.s32 %s183, 1
      %s185 = scalar_select %p182, %s183, %s184
      %p188 = pneg %p182
      %p189 = scmp.eq.s32.totalorder %s21, 1
      %p190 = por %p188, %p189
      %p191 = scmp.ne.s32.totalorder %s183, %s186
      %p192 = scmp.eq.s32.totalorder %s21, 0
      %p193 = por %p191, %p192
      %p194 = scmp.ne.s32.totalorder %s183, %s186
      %p195 = scmp.eq.s32.totalorder %s26, 1
      %p196 = por %p194, %p195
      %p197 = scmp.ne.s32.totalorder %s186, %s187
      %p198 = scmp.eq.s32.totalorder %s26, 0
      %p199 = por %p197, %p198
      %p200 = scmp.ne.s32.totalorder %s186, %s187
      %p201 = scmp.eq.s32.totalorder %s27, 1
      %p202 = por %p200, %p201
      %p204 = scmp.ne.s32.totalorder %s187, %s203
      %p205 = scmp.eq.s32.totalorder %s27, 0
      %p206 = por %p204, %p205
      %p207 = scmp.le.s32.totalorder 1, %s21
      %p208 = scmp.lt.s32.totalorder %s21, 3
      %p209 = pnand %p207, %p208
      %p210 = pneg %p209
      // Predicated region
      $region9: #{tpu_custom_call.1} parent=5 // pred_check
        _
      $region10: #{tpu_custom_call.1} parent=5 // pred_check_branch
        %212 = sbr.rel (%p209) target = $region12
      $region11: #{tpu_custom_call.1} parent=5 // pred_region
        %s213 = ssub.s32 %s21, 1
        // Predicated region
        $region13: #{tpu_custom_call.1} parent=11 // pred_check
          %p214 = pneg %p68
        $region14: #{tpu_custom_call.1} parent=11 // pred_check_branch
          %216 = sbr.rel (%p214) target = $region16
        $region15: #{tpu_custom_call.1} parent=11 // pred_region
          %s218 = ssub.s32 12544, 12544
          %219 = vsyncadd [#allocation6], %s218
          %s220 = sshll.u32 [#allocation5], 4
          %s221 = int_to_ptr.vmem [resolvable:$true] %s220
          %226 = dma.hbm_to_vmem [thread:$0]  %s1, 12544, %s221, [#allocation6], 128, 128, 8
        $region16: #{tpu_custom_call.1} parent=11 // pred_fallthru
          _
        // Predicated region
        $region17: #{tpu_custom_call.1} parent=11 // pred_check
          %p227 = pneg %p89
        $region18: #{tpu_custom_call.1} parent=11 // pred_check_branch
          %229 = sbr.rel (%p227) target = $region20
        $region19: #{tpu_custom_call.1} parent=11 // pred_region
          _
        $region20: #{tpu_custom_call.1} parent=11 // pred_fallthru
          _
        // Predicated region
        $region21: #{tpu_custom_call.1} parent=11 // pred_check
          %p230 = pneg %p110
        $region22: #{tpu_custom_call.1} parent=11 // pred_check_branch
          %232 = sbr.rel (%p230) target = $region24
        $region23: #{tpu_custom_call.1} parent=11 // pred_region
          %s234 = ssub.s32 4096, 4096
          %235 = vsyncadd [#allocation6], %s234
          %s236 = sshll.u32 [#allocation7], 4
          %s237 = int_to_ptr.vmem [resolvable:$true] %s236
          %242 = dma.hbm_to_vmem [thread:$0]  %s3, 4096, %s237, [#allocation6], 128, 128, 8
        $region24: #{tpu_custom_call.1} parent=11 // pred_fallthru
          _
        // Predicated region
        $region25: #{tpu_custom_call.1} parent=11 // pred_check
          %p243 = pneg %p131
        $region26: #{tpu_custom_call.1} parent=11 // pred_check_branch
          %245 = sbr.rel (%p243) target = $region28
        $region27: #{tpu_custom_call.1} parent=11 // pred_region
          _
        $region28: #{tpu_custom_call.1} parent=11 // pred_fallthru
          _
        // Predicated region
        $region29: #{tpu_custom_call.1} parent=11 // pred_check
          %p246 = pneg %p152
        $region30: #{tpu_custom_call.1} parent=11 // pred_check_branch
          %248 = sbr.rel (%p246) target = $region32
        $region31: #{tpu_custom_call.1} parent=11 // pred_region
          %s250 = ssub.s32 2048, 2048
          %251 = vsyncadd [#allocation9], %s250
          %s252 = sshll.u32 [#allocation8], 4
          %s253 = int_to_ptr.vmem [resolvable:$true] %s252
          %258 = dma.hbm_to_vmem [thread:$0]  %s5, 2048, %s253, [#allocation9], 64, 64, 4
        $region32: #{tpu_custom_call.1} parent=11 // pred_fallthru
          _
        // Predicated region
        $region33: #{tpu_custom_call.1} parent=11 // pred_check
          %p259 = pneg %p173
        $region34: #{tpu_custom_call.1} parent=11 // pred_check_branch
          %261 = sbr.rel (%p259) target = $region36
        $region35: #{tpu_custom_call.1} parent=11 // pred_region
          _
        $region36: #{tpu_custom_call.1} parent=11 // pred_fallthru
          _
      $region12: #{tpu_custom_call.1} parent=5 // pred_fallthru
        _
      %p262 = scmp.lt.s32.totalorder %s21, 2
      // Predicated region
      $region37: #{tpu_custom_call.1} parent=5 // pred_check
        %p263 = pneg %p262
      $region38: #{tpu_custom_call.1} parent=5 // pred_check_branch
        %265 = sbr.rel (%p263) target = $region40
      $region39: #{tpu_custom_call.1} parent=5 // pred_region
        // Predicated region
        $region41: #{tpu_custom_call.1} parent=39 // pred_check
          %p266 = pneg %p41
        $region42: #{tpu_custom_call.1} parent=39 // pred_check_branch
          %268 = sbr.rel (%p266) target = $region44
        $region43: #{tpu_custom_call.1} parent=39 // pred_region
          %s269 = sand.u32 %s31, 1
          %s270 = scalar_lea.sflag [#allocation3], %s269
          %s271 = sand.u32 %s31, 1
          %s272 = smul.addr %s271, 112
          %s273 = scalar_lea.vmem [#allocation2], %s272
          %s274 = smul.u32 2, %s21
          %s276 = ssub.s32 1792, 1792
          %277 = vsyncadd %s270, %s276
          %s278 = smul.addr %s274, 7
          %s279 = smul.addr %s278, 128
          %s280 = scalar_lea.hbm %s0, %s279
          %s281 = sshll.u32 %s273, 4
          %s282 = int_to_ptr.vmem [resolvable:$true] %s281
          %287 = dma.hbm_to_vmem [thread:$0]  %s280, 1792, %s282, %s270, 896, 896, 56
        $region44: #{tpu_custom_call.1} parent=39 // pred_fallthru
          _
      $region40: #{tpu_custom_call.1} parent=5 // pred_fallthru
        _
      %p288 = scmp.le.s32.totalorder 1, %s21
      %p289 = scmp.lt.s32.totalorder %s21, 3
      %p290 = pnand %p288, %p289
      %p291 = pneg %p290
      // Predicated region
      $region45: #{tpu_custom_call.1} parent=5 // pred_check
        _
      $region46: #{tpu_custom_call.1} parent=5 // pred_check_branch
        %293 = sbr.rel (%p290) target = $region48
      $region47: #{tpu_custom_call.1} parent=5 // pred_region
        %s294 = ssub.s32 %s21, 1
        %s295 = sand.u32 %s34, 1
        %s296 = scalar_lea.sflag [#allocation3], %s295
        %s297 = sand.u32 %s34, 1
        %s298 = smul.addr %s297, 112
        %s299 = scalar_lea.vmem [#allocation2], %s298
        // Predicated region
        $region49: #{tpu_custom_call.1} parent=47 // pred_check
          %p300 = pneg %p47
        $region50: #{tpu_custom_call.1} parent=47 // pred_check_branch
          %302 = sbr.rel (%p300) target = $region52
        $region51: #{tpu_custom_call.1} parent=47 // pred_region
          %303 = dma.done %s296, 1792
        $region52: #{tpu_custom_call.1} parent=47 // pred_fallthru
          _
        // Predicated region
        $region53: #{tpu_custom_call.1} parent=47 // pred_check
          %p304 = pneg %p68
        $region54: #{tpu_custom_call.1} parent=47 // pred_check_branch
          %306 = sbr.rel (%p304) target = $region56
        $region55: #{tpu_custom_call.1} parent=47 // pred_region
          %307 = dma.done [#allocation6], 12544
        $region56: #{tpu_custom_call.1} parent=47 // pred_fallthru
          _
        // Predicated region
        $region57: #{tpu_custom_call.1} parent=47 // pred_check
          %p308 = pneg %p110
        $region58: #{tpu_custom_call.1} parent=47 // pred_check_branch
          %310 = sbr.rel (%p308) target = $region60
        $region59: #{tpu_custom_call.1} parent=47 // pred_region
          %311 = dma.done [#allocation6], 4096
        $region60: #{tpu_custom_call.1} parent=47 // pred_fallthru
          _
        // Predicated region
        $region61: #{tpu_custom_call.1} parent=47 // pred_check
          %p312 = pneg %p152
        $region62: #{tpu_custom_call.1} parent=47 // pred_check_branch
          %314 = sbr.rel (%p312) target = $region64
        $region63: #{tpu_custom_call.1} parent=47 // pred_region
          %315 = dma.done [#allocation9], 2048
        $region64: #{tpu_custom_call.1} parent=47 // pred_fallthru
          _
        %s316 = sand.u32 %s34, 1
        %s317 = scalar_lea.sflag [#allocation3], %s316
        %s318 = sand.u32 %s34, 1
        %s319 = smul.addr %s318, 112
        %s320 = scalar_lea.vmem [#allocation2], %s319
        %p321 = pneg %p47
        %p322 = pneg %p44
        %p323 = pneg %p68
        %p324 = pneg %p65
        %p325 = pneg %p89
        %p326 = pneg %p86
        %p327 = pneg %p110
        %p328 = pneg %p107
        %p329 = pneg %p131
        %p330 = pneg %p128
        %p331 = pneg %p152
        %p332 = pneg %p149
        %p333 = pneg %p173
        %p334 = pneg %p170
        %p335 = pneg %p199
        %p336 = pneg %p196
        %s337 = sand.u32 %s186, 1
        %s338 = scalar_lea.sflag [#allocation4], %s337
        %s339 = sand.u32 %s186, 1
        %s340 = smul.addr %s339, 8
        %s341 = scalar_lea.vmem [#allocation10], %s340
        %s342 = smul.u32 2, %s26
        %s343 = smul.u32 2, %s26
        %v345 = vld [vmem:[%s299] sm:$0xff]
        %v346 = vld [vmem:[%s299 + $0x8] sm:$0xff]
        %v347 = vld [vmem:[%s299 + $0x10] sm:$0xff]
        %v348 = vld [vmem:[%s299 + $0x18] sm:$0xff]
        %v349 = vld [vmem:[%s299 + $0x20] sm:$0xff]
        %v350 = vld [vmem:[%s299 + $0x28] sm:$0xff]
        %v351 = vld [vmem:[%s299 + $0x30] sm:$0xff]
        %v352 = vld [vmem:[%s299 + $0x38] sm:$0xff]
        %v353 = vld [vmem:[%s299 + $0x40] sm:$0xff]
        %v354 = vld [vmem:[%s299 + $0x48] sm:$0xff]
        %v355 = vld [vmem:[%s299 + $0x50] sm:$0xff]
        %v356 = vld [vmem:[%s299 + $0x58] sm:$0xff]
        %v357 = vld [vmem:[%s299 + $0x60] sm:$0xff]
        %v358 = vld [vmem:[%s299 + $0x68] sm:$0xff]
        %v359 = vpack.c.bf16 %v352, %v345
        %v360 = vpack.c.bf16 %v353, %v346
        %v361 = vpack.c.bf16 %v354, %v347
        %v362 = vpack.c.bf16 %v355, %v348
        %v363 = vpack.c.bf16 %v356, %v349
        %v364 = vpack.c.bf16 %v357, %v350
        %v365 = vpack.c.bf16 %v358, %v351
        %v366 = vld [vmem:[#allocation5] sm:$0xff]
        %v367 = vld [vmem:[#allocation5 + $0x8] sm:$0xff]
        %v368 = vld [vmem:[#allocation5 + $0x10] sm:$0xff]
        %v369 = vld [vmem:[#allocation5 + $0x18] sm:$0xff]
        %v370 = vld [vmem:[#allocation5 + $0x20] sm:$0xff]
        %v371 = vld [vmem:[#allocation5 + $0x28] sm:$0xff]
        %v372 = vld [vmem:[#allocation5 + $0x30] sm:$0xff]
        %v373 = vld [vmem:[#allocation5 + $0x38] sm:$0xff]
        %v374 = vld [vmem:[#allocation5 + $0x40] sm:$0xff]
        %v375 = vld [vmem:[#allocation5 + $0x48] sm:$0xff]
        %v376 = vld [vmem:[#allocation5 + $0x50] sm:$0xff]
        %v377 = vld [vmem:[#allocation5 + $0x58] sm:$0xff]
        %v378 = vld [vmem:[#allocation5 + $0x60] sm:$0xff]
        %v379 = vld [vmem:[#allocation5 + $0x68] sm:$0xff]
        %v380 = vld [vmem:[#allocation5 + $0x70] sm:$0xff]
        %v381 = vld [vmem:[#allocation5 + $0x78] sm:$0xff]
        %v382 = vld [vmem:[#allocation5 + $0x80] sm:$0xff]
        %v383 = vld [vmem:[#allocation5 + $0x88] sm:$0xff]
        %v384 = vld [vmem:[#allocation5 + $0x90] sm:$0xff]
        %v385 = vld [vmem:[#allocation5 + $0x98] sm:$0xff]
        %v386 = vld [vmem:[#allocation5 + $0xa0] sm:$0xff]
        %v387 = vld [vmem:[#allocation5 + $0xa8] sm:$0xff]
        %v388 = vld [vmem:[#allocation5 + $0xb0] sm:$0xff]
        %v389 = vld [vmem:[#allocation5 + $0xb8] sm:$0xff]
        %v390 = vld [vmem:[#allocation5 + $0xc0] sm:$0xff]
        %v391 = vld [vmem:[#allocation5 + $0xc8] sm:$0xff]
        %v392 = vld [vmem:[#allocation5 + $0xd0] sm:$0xff]
        %v393 = vld [vmem:[#allocation5 + $0xd8] sm:$0xff]
        %v394 = vld [vmem:[#allocation5 + $0xe0] sm:$0xff]
        %v395 = vld [vmem:[#allocation5 + $0xe8] sm:$0xff]
        %v396 = vld [vmem:[#allocation5 + $0xf0] sm:$0xff]
        %v397 = vld [vmem:[#allocation5 + $0xf8] sm:$0xff]
        %v398 = vld [vmem:[#allocation5 + $0x100] sm:$0xff]
        %v399 = vld [vmem:[#allocation5 + $0x108] sm:$0xff]
        %v400 = vld [vmem:[#allocation5 + $0x110] sm:$0xff]
        %v401 = vld [vmem:[#allocation5 + $0x118] sm:$0xff]
        %v402 = vld [vmem:[#allocation5 + $0x120] sm:$0xff]
        %v403 = vld [vmem:[#allocation5 + $0x128] sm:$0xff]
        %v404 = vld [vmem:[#allocation5 + $0x130] sm:$0xff]
        %v405 = vld [vmem:[#allocation5 + $0x138] sm:$0xff]
        %v406 = vld [vmem:[#allocation5 + $0x140] sm:$0xff]
        %v407 = vld [vmem:[#allocation5 + $0x148] sm:$0xff]
        %v408 = vld [vmem:[#allocation5 + $0x150] sm:$0xff]
        %v409 = vld [vmem:[#allocation5 + $0x158] sm:$0xff]
        %v410 = vld [vmem:[#allocation5 + $0x160] sm:$0xff]
        %v411 = vld [vmem:[#allocation5 + $0x168] sm:$0xff]
        %v412 = vld [vmem:[#allocation5 + $0x170] sm:$0xff]
        %v413 = vld [vmem:[#allocation5 + $0x178] sm:$0xff]
        %v414 = vld [vmem:[#allocation5 + $0x180] sm:$0xff]
        %v415 = vld [vmem:[#allocation5 + $0x188] sm:$0xff]
        %v416 = vld [vmem:[#allocation5 + $0x190] sm:$0xff]
        %v417 = vld [vmem:[#allocation5 + $0x198] sm:$0xff]
        %v418 = vld [vmem:[#allocation5 + $0x1a0] sm:$0xff]
        %v419 = vld [vmem:[#allocation5 + $0x1a8] sm:$0xff]
        %v420 = vld [vmem:[#allocation5 + $0x1b0] sm:$0xff]
        %v421 = vld [vmem:[#allocation5 + $0x1b8] sm:$0xff]
        %v422 = vld [vmem:[#allocation5 + $0x1c0] sm:$0xff]
        %v423 = vld [vmem:[#allocation5 + $0x1c8] sm:$0xff]
        %v424 = vld [vmem:[#allocation5 + $0x1d0] sm:$0xff]
        %v425 = vld [vmem:[#allocation5 + $0x1d8] sm:$0xff]
        %v426 = vld [vmem:[#allocation5 + $0x1e0] sm:$0xff]
        %v427 = vld [vmem:[#allocation5 + $0x1e8] sm:$0xff]
        %v428 = vld [vmem:[#allocation5 + $0x1f0] sm:$0xff]
        %v429 = vld [vmem:[#allocation5 + $0x1f8] sm:$0xff]
        %v430 = vld [vmem:[#allocation5 + $0x200] sm:$0xff]
        %v431 = vld [vmem:[#allocation5 + $0x208] sm:$0xff]
        %v432 = vld [vmem:[#allocation5 + $0x210] sm:$0xff]
        %v433 = vld [vmem:[#allocation5 + $0x218] sm:$0xff]
        %v434 = vld [vmem:[#allocation5 + $0x220] sm:$0xff]
        %v435 = vld [vmem:[#allocation5 + $0x228] sm:$0xff]
        %v436 = vld [vmem:[#allocation5 + $0x230] sm:$0xff]
        %v437 = vld [vmem:[#allocation5 + $0x238] sm:$0xff]
        %v438 = vld [vmem:[#allocation5 + $0x240] sm:$0xff]
        %v439 = vld [vmem:[#allocation5 + $0x248] sm:$0xff]
        %v440 = vld [vmem:[#allocation5 + $0x250] sm:$0xff]
        %v441 = vld [vmem:[#allocation5 + $0x258] sm:$0xff]
        %v442 = vld [vmem:[#allocation5 + $0x260] sm:$0xff]
        %v443 = vld [vmem:[#allocation5 + $0x268] sm:$0xff]
        %v444 = vld [vmem:[#allocation5 + $0x270] sm:$0xff]
        %v445 = vld [vmem:[#allocation5 + $0x278] sm:$0xff]
        %v446 = vld [vmem:[#allocation5 + $0x280] sm:$0xff]
        %v447 = vld [vmem:[#allocation5 + $0x288] sm:$0xff]
        %v448 = vld [vmem:[#allocation5 + $0x290] sm:$0xff]
        %v449 = vld [vmem:[#allocation5 + $0x298] sm:$0xff]
        %v450 = vld [vmem:[#allocation5 + $0x2a0] sm:$0xff]
        %v451 = vld [vmem:[#allocation5 + $0x2a8] sm:$0xff]
        %v452 = vld [vmem:[#allocation5 + $0x2b0] sm:$0xff]
        %v453 = vld [vmem:[#allocation5 + $0x2b8] sm:$0xff]
        %v454 = vld [vmem:[#allocation5 + $0x2c0] sm:$0xff]
        %v455 = vld [vmem:[#allocation5 + $0x2c8] sm:$0xff]
        %v456 = vld [vmem:[#allocation5 + $0x2d0] sm:$0xff]
        %v457 = vld [vmem:[#allocation5 + $0x2d8] sm:$0xff]
        %v458 = vld [vmem:[#allocation5 + $0x2e0] sm:$0xff]
        %v459 = vld [vmem:[#allocation5 + $0x2e8] sm:$0xff]
        %v460 = vld [vmem:[#allocation5 + $0x2f0] sm:$0xff]
        %v461 = vld [vmem:[#allocation5 + $0x2f8] sm:$0xff]
        %v462 = vld [vmem:[#allocation5 + $0x300] sm:$0xff]
        %v463 = vld [vmem:[#allocation5 + $0x308] sm:$0xff]
        %v464 = vld [vmem:[%s2] sm:$0x3]
        %v466 = vlaneseq
        %v467 = vshrl.u32 %v466, 7
        %v468 = vsub.s32 0, %v467
        %v469 = vrot.slane %v464, %v468
        %v470 = vlaneseq
        %v471 = vshrl.u32 %v470, 7
        %v472 = vsub.s32 1, %v471
        %v473 = vrot.slane %v464, %v472
        %v574 = vunpack.c.l.b16 %v366
        %v575 = vunpack.c.h.b16 %v366
        %v576 = vunpack.c.l.b16 %v367
        %v577 = vunpack.c.h.b16 %v367
        %v578 = vunpack.c.l.b16 %v368
        %v579 = vunpack.c.h.b16 %v368
        %v580 = vunpack.c.l.b16 %v369
        %v581 = vunpack.c.h.b16 %v369
        %v582 = vunpack.c.l.b16 %v370
        %v583 = vunpack.c.h.b16 %v370
        %v584 = vunpack.c.l.b16 %v371
        %v585 = vunpack.c.h.b16 %v371
        %v586 = vunpack.c.l.b16 %v372
        %v587 = vunpack.c.h.b16 %v372
        %v588 = vunpack.c.l.b16 %v373
        %v589 = vunpack.c.h.b16 %v373
        %v590 = vunpack.c.l.b16 %v374
        %v591 = vunpack.c.h.b16 %v374
        %v592 = vunpack.c.l.b16 %v375
        %v593 = vunpack.c.h.b16 %v375
        %v594 = vunpack.c.l.b16 %v376
        %v595 = vunpack.c.h.b16 %v376
        %v596 = vunpack.c.l.b16 %v377
        %v597 = vunpack.c.h.b16 %v377
        %v598 = vunpack.c.l.b16 %v378
        %v599 = vunpack.c.h.b16 %v378
        %v600 = vunpack.c.l.b16 %v379
        %v601 = vunpack.c.h.b16 %v379
        %v602 = vunpack.c.l.b16 %v380
        %v603 = vunpack.c.h.b16 %v380
        %v604 = vunpack.c.l.b16 %v381
        %v605 = vunpack.c.h.b16 %v381
        %v606 = vunpack.c.l.b16 %v382
        %v607 = vunpack.c.h.b16 %v382
        %v608 = vunpack.c.l.b16 %v383
        %v609 = vunpack.c.h.b16 %v383
        %v610 = vunpack.c.l.b16 %v384
        %v611 = vunpack.c.h.b16 %v384
        %v612 = vunpack.c.l.b16 %v385
        %v613 = vunpack.c.h.b16 %v385
        %v614 = vunpack.c.l.b16 %v386
        %v615 = vunpack.c.h.b16 %v386
        %v616 = vunpack.c.l.b16 %v387
        %v617 = vunpack.c.h.b16 %v387
        %v618 = vunpack.c.l.b16 %v388
        %v619 = vunpack.c.h.b16 %v388
        %v620 = vunpack.c.l.b16 %v389
        %v621 = vunpack.c.h.b16 %v389
        %v622 = vunpack.c.l.b16 %v390
        %v623 = vunpack.c.h.b16 %v390
        %v624 = vunpack.c.l.b16 %v391
        %v625 = vunpack.c.h.b16 %v391
        %v626 = vunpack.c.l.b16 %v392
        %v627 = vunpack.c.h.b16 %v392
        %v628 = vunpack.c.l.b16 %v393
        %v629 = vunpack.c.h.b16 %v393
        %v630 = vunpack.c.l.b16 %v394
        %v631 = vunpack.c.h.b16 %v394
        %v632 = vunpack.c.l.b16 %v395
        %v633 = vunpack.c.h.b16 %v395
        %v634 = vunpack.c.l.b16 %v396
        %v635 = vunpack.c.h.b16 %v396
        %v636 = vunpack.c.l.b16 %v397
        %v637 = vunpack.c.h.b16 %v397
        %v638 = vunpack.c.l.b16 %v398
        %v639 = vunpack.c.h.b16 %v398
        %v640 = vunpack.c.l.b16 %v399
        %v641 = vunpack.c.h.b16 %v399
        %v642 = vunpack.c.l.b16 %v400
        %v643 = vunpack.c.h.b16 %v400
        %v644 = vunpack.c.l.b16 %v401
        %v645 = vunpack.c.h.b16 %v401
        %v646 = vunpack.c.l.b16 %v402
        %v647 = vunpack.c.h.b16 %v402
        %v648 = vunpack.c.l.b16 %v403
        %v649 = vunpack.c.h.b16 %v403
        %v650 = vunpack.c.l.b16 %v404
        %v651 = vunpack.c.h.b16 %v404
        %v652 = vunpack.c.l.b16 %v405
        %v653 = vunpack.c.h.b16 %v405
        %v654 = vunpack.c.l.b16 %v406
        %v655 = vunpack.c.h.b16 %v406
        %v656 = vunpack.c.l.b16 %v407
        %v657 = vunpack.c.h.b16 %v407
        %v658 = vunpack.c.l.b16 %v408
        %v659 = vunpack.c.h.b16 %v408
        %v660 = vunpack.c.l.b16 %v409
        %v661 = vunpack.c.h.b16 %v409
        %v662 = vunpack.c.l.b16 %v410
        %v663 = vunpack.c.h.b16 %v410
        %v664 = vunpack.c.l.b16 %v411
        %v665 = vunpack.c.h.b16 %v411
        %v666 = vunpack.c.l.b16 %v412
        %v667 = vunpack.c.h.b16 %v412
        %v668 = vunpack.c.l.b16 %v413
        %v669 = vunpack.c.h.b16 %v413
        %v670 = vunpack.c.l.b16 %v414
        %v671 = vunpack.c.h.b16 %v414
        %v672 = vunpack.c.l.b16 %v415
        %v673 = vunpack.c.h.b16 %v415
        %v674 = vunpack.c.l.b16 %v416
        %v675 = vunpack.c.h.b16 %v416
        %v676 = vunpack.c.l.b16 %v417
        %v677 = vunpack.c.h.b16 %v417
        %v678 = vunpack.c.l.b16 %v418
        %v679 = vunpack.c.h.b16 %v418
        %v680 = vunpack.c.l.b16 %v419
        %v681 = vunpack.c.h.b16 %v419
        %v682 = vunpack.c.l.b16 %v420
        %v683 = vunpack.c.h.b16 %v420
        %v684 = vunpack.c.l.b16 %v421
        %v685 = vunpack.c.h.b16 %v421
        %v686 = vunpack.c.l.b16 %v422
        %v687 = vunpack.c.h.b16 %v422
        %v688 = vunpack.c.l.b16 %v423
        %v689 = vunpack.c.h.b16 %v423
        %v690 = vunpack.c.l.b16 %v424
        %v691 = vunpack.c.h.b16 %v424
        %v692 = vunpack.c.l.b16 %v425
        %v693 = vunpack.c.h.b16 %v425
        %v694 = vunpack.c.l.b16 %v426
        %v695 = vunpack.c.h.b16 %v426
        %v696 = vunpack.c.l.b16 %v427
        %v697 = vunpack.c.h.b16 %v427
        %v698 = vunpack.c.l.b16 %v428
        %v699 = vunpack.c.h.b16 %v428
        %v700 = vunpack.c.l.b16 %v429
        %v701 = vunpack.c.h.b16 %v429
        %v702 = vunpack.c.l.b16 %v430
        %v703 = vunpack.c.h.b16 %v430
        %v704 = vunpack.c.l.b16 %v431
        %v705 = vunpack.c.h.b16 %v431
        %v706 = vunpack.c.l.b16 %v432
        %v707 = vunpack.c.h.b16 %v432
        %v708 = vunpack.c.l.b16 %v433
        %v709 = vunpack.c.h.b16 %v433
        %v710 = vunpack.c.l.b16 %v434
        %v711 = vunpack.c.h.b16 %v434
        %v712 = vunpack.c.l.b16 %v435
        %v713 = vunpack.c.h.b16 %v435
        %v714 = vunpack.c.l.b16 %v436
        %v715 = vunpack.c.h.b16 %v436
        %v716 = vunpack.c.l.b16 %v437
        %v717 = vunpack.c.h.b16 %v437
        %v718 = vunpack.c.l.b16 %v438
        %v719 = vunpack.c.h.b16 %v438
        %v720 = vunpack.c.l.b16 %v439
        %v721 = vunpack.c.h.b16 %v439
        %v722 = vunpack.c.l.b16 %v440
        %v723 = vunpack.c.h.b16 %v440
        %v724 = vunpack.c.l.b16 %v441
        %v725 = vunpack.c.h.b16 %v441
        %v726 = vunpack.c.l.b16 %v442
        %v727 = vunpack.c.h.b16 %v442
        %v728 = vunpack.c.l.b16 %v443
        %v729 = vunpack.c.h.b16 %v443
        %v730 = vunpack.c.l.b16 %v444
        %v731 = vunpack.c.h.b16 %v444
        %v732 = vunpack.c.l.b16 %v445
        %v733 = vunpack.c.h.b16 %v445
        %v734 = vunpack.c.l.b16 %v446
        %v735 = vunpack.c.h.b16 %v446
        %v736 = vunpack.c.l.b16 %v447
        %v737 = vunpack.c.h.b16 %v447
        %v738 = vunpack.c.l.b16 %v448
        %v739 = vunpack.c.h.b16 %v448
        %v740 = vunpack.c.l.b16 %v449
        %v741 = vunpack.c.h.b16 %v449
        %v742 = vunpack.c.l.b16 %v450
        %v743 = vunpack.c.h.b16 %v450
        %v744 = vunpack.c.l.b16 %v451
        %v745 = vunpack.c.h.b16 %v451
        %v746 = vunpack.c.l.b16 %v452
        %v747 = vunpack.c.h.b16 %v452
        %v748 = vunpack.c.l.b16 %v453
        %v749 = vunpack.c.h.b16 %v453
        %v750 = vunpack.c.l.b16 %v454
        %v751 = vunpack.c.h.b16 %v454
        %v752 = vunpack.c.l.b16 %v455
        %v753 = vunpack.c.h.b16 %v455
        %v754 = vunpack.c.l.b16 %v456
        %v755 = vunpack.c.h.b16 %v456
        %v756 = vunpack.c.l.b16 %v457
        %v757 = vunpack.c.h.b16 %v457
        %v758 = vunpack.c.l.b16 %v458
        %v759 = vunpack.c.h.b16 %v458
        %v760 = vunpack.c.l.b16 %v459
        %v761 = vunpack.c.h.b16 %v459
        %v762 = vunpack.c.l.b16 %v460
        %v763 = vunpack.c.h.b16 %v460
        %v764 = vunpack.c.l.b16 %v461
        %v765 = vunpack.c.h.b16 %v461
        %v766 = vunpack.c.l.b16 %v462
        %v767 = vunpack.c.h.b16 %v462
        %v768 = vunpack.c.l.b16 %v463
        %v769 = vunpack.c.h.b16 %v463
        %v770 = vpack.c.b16 %v576, %v574
        %v771 = vpack.c.b16 %v577, %v575
        %v772 = vpack.c.b16 %v580, %v578
        %v773 = vpack.c.b16 %v581, %v579
        %v774 = vpack.c.b16 %v584, %v582
        %v775 = vpack.c.b16 %v585, %v583
        %v776 = vpack.c.b16 %v588, %v586
        %v777 = vpack.c.b16 %v589, %v587
        %v778 = vpack.c.b16 %v592, %v590
        %v779 = vpack.c.b16 %v593, %v591
        %v780 = vpack.c.b16 %v596, %v594
        %v781 = vpack.c.b16 %v597, %v595
        %v782 = vpack.c.b16 %v600, %v598
        %v783 = vpack.c.b16 %v601, %v599
        %v784 = vpack.c.b16 %v604, %v602
        %v785 = vpack.c.b16 %v605, %v603
        %v786 = vpack.c.b16 %v608, %v606
        %v787 = vpack.c.b16 %v609, %v607
        %v788 = vpack.c.b16 %v612, %v610
        %v789 = vpack.c.b16 %v613, %v611
        %v790 = vpack.c.b16 %v616, %v614
        %v791 = vpack.c.b16 %v617, %v615
        %v792 = vpack.c.b16 %v620, %v618
        %v793 = vpack.c.b16 %v621, %v619
        %v794 = vpack.c.b16 %v624, %v622
        %v795 = vpack.c.b16 %v625, %v623
        %v796 = vpack.c.b16 %v628, %v626
        %v797 = vpack.c.b16 %v629, %v627
        %v798 = vpack.c.b16 %v632, %v630
        %v799 = vpack.c.b16 %v633, %v631
        %v800 = vpack.c.b16 %v636, %v634
        %v801 = vpack.c.b16 %v637, %v635
        %v802 = vpack.c.b16 %v640, %v638
        %v803 = vpack.c.b16 %v641, %v639
        %v804 = vpack.c.b16 %v644, %v642
        %v805 = vpack.c.b16 %v645, %v643
        %v806 = vpack.c.b16 %v648, %v646
        %v807 = vpack.c.b16 %v649, %v647
        %v808 = vpack.c.b16 %v652, %v650
        %v809 = vpack.c.b16 %v653, %v651
        %v810 = vpack.c.b16 %v656, %v654
        %v811 = vpack.c.b16 %v657, %v655
        %v812 = vpack.c.b16 %v660, %v658
        %v813 = vpack.c.b16 %v661, %v659
        %v814 = vpack.c.b16 %v664, %v662
        %v815 = vpack.c.b16 %v665, %v663
        %v816 = vpack.c.b16 %v668, %v666
        %v817 = vpack.c.b16 %v669, %v667
        %v818 = vpack.c.b16 %v672, %v670
        %v819 = vpack.c.b16 %v673, %v671
        %v820 = vpack.c.b16 %v676, %v674
        %v821 = vpack.c.b16 %v677, %v675
        %v822 = vpack.c.b16 %v680, %v678
        %v823 = vpack.c.b16 %v681, %v679
        %v824 = vpack.c.b16 %v684, %v682
        %v825 = vpack.c.b16 %v685, %v683
        %v826 = vpack.c.b16 %v688, %v686
        %v827 = vpack.c.b16 %v689, %v687
        %v828 = vpack.c.b16 %v692, %v690
        %v829 = vpack.c.b16 %v693, %v691
        %v830 = vpack.c.b16 %v696, %v694
        %v831 = vpack.c.b16 %v697, %v695
        %v832 = vpack.c.b16 %v700, %v698
        %v833 = vpack.c.b16 %v701, %v699
        %v834 = vpack.c.b16 %v704, %v702
        %v835 = vpack.c.b16 %v705, %v703
        %v836 = vpack.c.b16 %v708, %v706
        %v837 = vpack.c.b16 %v709, %v707
        %v838 = vpack.c.b16 %v712, %v710
        %v839 = vpack.c.b16 %v713, %v711
        %v840 = vpack.c.b16 %v716, %v714
        %v841 = vpack.c.b16 %v717, %v715
        %v842 = vpack.c.b16 %v720, %v718
        %v843 = vpack.c.b16 %v721, %v719
        %v844 = vpack.c.b16 %v724, %v722
        %v845 = vpack.c.b16 %v725, %v723
        %v846 = vpack.c.b16 %v728, %v726
        %v847 = vpack.c.b16 %v729, %v727
        %v848 = vpack.c.b16 %v732, %v730
        %v849 = vpack.c.b16 %v733, %v731
        %v850 = vpack.c.b16 %v736, %v734
        %v851 = vpack.c.b16 %v737, %v735
        %v852 = vpack.c.b16 %v740, %v738
        %v853 = vpack.c.b16 %v741, %v739
        %v854 = vpack.c.b16 %v744, %v742
        %v855 = vpack.c.b16 %v745, %v743
        %v856 = vpack.c.b16 %v748, %v746
        %v857 = vpack.c.b16 %v749, %v747
        %v858 = vpack.c.b16 %v752, %v750
        %v859 = vpack.c.b16 %v753, %v751
        %v860 = vpack.c.b16 %v756, %v754
        %v861 = vpack.c.b16 %v757, %v755
        %v862 = vpack.c.b16 %v760, %v758
        %v863 = vpack.c.b16 %v761, %v759
        %v864 = vpack.c.b16 %v764, %v762
        %v865 = vpack.c.b16 %v765, %v763
        %v866 = vpack.c.b16 %v768, %v766
        %v867 = vpack.c.b16 %v769, %v767
        %vm966 = vcmask 130048
        %v968 = vsel %vm966, %v365, 0
        %970 = vmatprep.subr.bf16.mxu0 %v771
        %971 = vmatpush1.bf16.msra.mxu0 %v770
        %972 = vmatprep.subr.bf16.mxu0 %v773
        %973 = vmatpush1.bf16.msra.mxu0 %v772
        %974 = vmatprep.subr.bf16.mxu0 %v775
        %975 = vmatpush1.bf16.msra.mxu0 %v774
        %976 = vmatprep.subr.bf16.mxu0 %v777
        %977 = vmatpush1.bf16.msra.mxu0 %v776
        %978 = vmatprep.subr.bf16.mxu0 %v779
        %979 = vmatpush1.bf16.msra.mxu0 %v778
        %980 = vmatprep.subr.bf16.mxu0 %v781
        %981 = vmatpush1.bf16.msra.mxu0 %v780
        %982 = vmatprep.subr.bf16.mxu0 %v783
        %983 = vmatpush1.bf16.msra.mxu0 %v782
        %984 = vmatprep.subr.bf16.mxu0 %v785
        %985 = vmatpush1.bf16.msra.mxu0 %v784
        %986 = vmatprep.subr.bf16.mxu0 %v787
        %987 = vmatpush1.bf16.msra.mxu0 %v786
        %988 = vmatprep.subr.bf16.mxu0 %v789
        %989 = vmatpush1.bf16.msra.mxu0 %v788
        %990 = vmatprep.subr.bf16.mxu0 %v791
        %991 = vmatpush1.bf16.msra.mxu0 %v790
        %992 = vmatprep.subr.bf16.mxu0 %v793
        %993 = vmatpush1.bf16.msra.mxu0 %v792
        %994 = vmatprep.subr.bf16.mxu0 %v795
        %995 = vmatpush1.bf16.msra.mxu0 %v794
        %996 = vmatprep.subr.bf16.mxu0 %v797
        %997 = vmatpush1.bf16.msra.mxu0 %v796
        %998 = vmatprep.subr.bf16.mxu0 %v799
        %999 = vmatpush1.bf16.msra.mxu0 %v798
        %1000 = vmatprep.subr.bf16.mxu0 %v801
        %1001 = vmatpush1.bf16.msra.mxu0 %v800
        %1002 = vmatprep.mubr.bf16.mxu0 %v360
        %1003 = vmatmul.mubr.bf16.gmra.mrb[0].mxu0 %v359
        %v1004 = vpop.f32.mrb[0].mxu0
        %v1005 = vadd.f32 %v469, %v1004
        %v1006 = vpop.f32.mrb[0].mxu0
        %v1007 = vadd.f32 %v473, %v1006
        %v1008 = vpop.f32.mrb[0].mxu0
        %v1009 = vadd.f32 %v469, %v1008
        %v1010 = vpop.f32.mrb[0].mxu0
        %v1011 = vadd.f32 %v473, %v1010
        %1012 = vdwg.mxu0
        %1013 = vmatprep.subr.bf16.mxu0 %v803
        %1014 = vmatpush1.bf16.msra.mxu0 %v802
        %1015 = vmatprep.subr.bf16.mxu0 %v805
        %1016 = vmatpush1.bf16.msra.mxu0 %v804
        %1017 = vmatprep.subr.bf16.mxu0 %v807
        %1018 = vmatpush1.bf16.msra.mxu0 %v806
        %1019 = vmatprep.subr.bf16.mxu0 %v809
        %1020 = vmatpush1.bf16.msra.mxu0 %v808
        %1021 = vmatprep.subr.bf16.mxu0 %v811
        %1022 = vmatpush1.bf16.msra.mxu0 %v810
        %1023 = vmatprep.subr.bf16.mxu0 %v813
        %1024 = vmatpush1.bf16.msra.mxu0 %v812
        %1025 = vmatprep.subr.bf16.mxu0 %v815
        %1026 = vmatpush1.bf16.msra.mxu0 %v814
        %1027 = vmatprep.subr.bf16.mxu0 %v817
        %1028 = vmatpush1.bf16.msra.mxu0 %v816
        %1029 = vmatprep.subr.bf16.mxu0 %v819
        %1030 = vmatpush1.bf16.msra.mxu0 %v818
        %1031 = vmatprep.subr.bf16.mxu0 %v821
        %1032 = vmatpush1.bf16.msra.mxu0 %v820
        %1033 = vmatprep.subr.bf16.mxu0 %v823
        %1034 = vmatpush1.bf16.msra.mxu0 %v822
        %1035 = vmatprep.subr.bf16.mxu0 %v825
        %1036 = vmatpush1.bf16.msra.mxu0 %v824
        %1037 = vmatprep.subr.bf16.mxu0 %v827
        %1038 = vmatpush1.bf16.msra.mxu0 %v826
        %1039 = vmatprep.subr.bf16.mxu0 %v829
        %1040 = vmatpush1.bf16.msra.mxu0 %v828
        %1041 = vmatprep.subr.bf16.mxu0 %v831
        %1042 = vmatpush1.bf16.msra.mxu0 %v830
        %1043 = vmatprep.subr.bf16.mxu0 %v833
        %1044 = vmatpush1.bf16.msra.mxu0 %v832
        %1045 = vmatprep.mubr.bf16.mxu0 %v362
        %1046 = vmatmul.mubr.bf16.gmra.mrb[0].mxu0 %v361
        %v1047 = vpop.f32.mrb[0].mxu0
        %v1048 = vadd.f32 %v1005, %v1047
        %v1049 = vpop.f32.mrb[0].mxu0
        %v1050 = vadd.f32 %v1007, %v1049
        %v1051 = vpop.f32.mrb[0].mxu0
        %v1052 = vadd.f32 %v1009, %v1051
        %v1053 = vpop.f32.mrb[0].mxu0
        %v1054 = vadd.f32 %v1011, %v1053
        %1055 = vdwg.mxu0
        %1056 = vmatprep.subr.bf16.mxu0 %v835
        %1057 = vmatpush1.bf16.msra.mxu0 %v834
        %1058 = vmatprep.subr.bf16.mxu0 %v837
        %1059 = vmatpush1.bf16.msra.mxu0 %v836
        %1060 = vmatprep.subr.bf16.mxu0 %v839
        %1061 = vmatpush1.bf16.msra.mxu0 %v838
        %1062 = vmatprep.subr.bf16.mxu0 %v841
        %1063 = vmatpush1.bf16.msra.mxu0 %v840
        %1064 = vmatprep.subr.bf16.mxu0 %v843
        %1065 = vmatpush1.bf16.msra.mxu0 %v842
        %1066 = vmatprep.subr.bf16.mxu0 %v845
        %1067 = vmatpush1.bf16.msra.mxu0 %v844
        %1068 = vmatprep.subr.bf16.mxu0 %v847
        %1069 = vmatpush1.bf16.msra.mxu0 %v846
        %1070 = vmatprep.subr.bf16.mxu0 %v849
        %1071 = vmatpush1.bf16.msra.mxu0 %v848
        %1072 = vmatprep.subr.bf16.mxu0 %v851
        %1073 = vmatpush1.bf16.msra.mxu0 %v850
        %1074 = vmatprep.subr.bf16.mxu0 %v853
        %1075 = vmatpush1.bf16.msra.mxu0 %v852
        %1076 = vmatprep.subr.bf16.mxu0 %v855
        %1077 = vmatpush1.bf16.msra.mxu0 %v854
        %1078 = vmatprep.subr.bf16.mxu0 %v857
        %1079 = vmatpush1.bf16.msra.mxu0 %v856
        %1080 = vmatprep.subr.bf16.mxu0 %v859
        %1081 = vmatpush1.bf16.msra.mxu0 %v858
        %1082 = vmatprep.subr.bf16.mxu0 %v861
        %1083 = vmatpush1.bf16.msra.mxu0 %v860
        %1084 = vmatprep.subr.bf16.mxu0 %v863
        %1085 = vmatpush1.bf16.msra.mxu0 %v862
        %1086 = vmatprep.subr.bf16.mxu0 %v865
        %1087 = vmatpush1.bf16.msra.mxu0 %v864
        %1088 = vmatprep.mubr.bf16.mxu0 %v364
        %1089 = vmatmul.mubr.bf16.gmra.mrb[0].mxu0 %v363
        %v1090 = vpop.f32.mrb[0].mxu0
        %v1091 = vadd.f32 %v1048, %v1090
        %v1092 = vpop.f32.mrb[0].mxu0
        %v1093 = vadd.f32 %v1050, %v1092
        %v1094 = vpop.f32.mrb[0].mxu0
        %v1095 = vadd.f32 %v1052, %v1094
        %v1096 = vpop.f32.mrb[0].mxu0
        %v1097 = vadd.f32 %v1054, %v1096
        %1098 = vdwg.mxu0
        %1099 = vmatprep.subr.bf16.mxu0 %v867
        %1100 = vmatpush1.bf16.msra.mxu0 %v866
        %1101 = vmatprep.subr.bf16.mxu0 0
        %1102 = vmatpush1.bf16.msra.mxu0 0
        %1103 = vmatprep.subr.bf16.mxu0 0
        %1104 = vmatpush1.bf16.msra.mxu0 0
        %1105 = vmatprep.subr.bf16.mxu0 0
        %1106 = vmatpush1.bf16.msra.mxu0 0
        %1107 = vmatprep.subr.bf16.mxu0 0
        %1108 = vmatpush1.bf16.msra.mxu0 0
        %1109 = vmatprep.subr.bf16.mxu0 0
        %1110 = vmatpush1.bf16.msra.mxu0 0
        %1111 = vmatprep.subr.bf16.mxu0 0
        %1112 = vmatpush1.bf16.msra.mxu0 0
        %1113 = vmatprep.subr.bf16.mxu0 0
        %1114 = vmatpush1.bf16.msra.mxu0 0
        %1115 = vmatprep.subr.bf16.mxu0 0
        %1116 = vmatpush1.bf16.msra.mxu0 0
        %1117 = vmatprep.subr.bf16.mxu0 0
        %1118 = vmatpush1.bf16.msra.mxu0 0
        %1119 = vmatprep.subr.bf16.mxu0 0
        %1120 = vmatpush1.bf16.msra.mxu0 0
        %1121 = vmatprep.subr.bf16.mxu0 0
        %1122 = vmatpush1.bf16.msra.mxu0 0
        %1123 = vmatprep.subr.bf16.mxu0 0
        %1124 = vmatpush1.bf16.msra.mxu0 0
        %1125 = vmatprep.subr.bf16.mxu0 0
        %1126 = vmatpush1.bf16.msra.mxu0 0
        %1127 = vmatprep.subr.bf16.mxu0 0
        %1128 = vmatpush1.bf16.msra.mxu0 0
        %1129 = vmatprep.subr.bf16.mxu0 0
        %1130 = vmatpush1.bf16.msra.mxu0 0
        %1131 = vmatprep.mubr.bf16.mxu0 0
        %1132 = vmatmul.mubr.bf16.gmra.mrb[0].mxu0 %v968
        %v1133 = vpop.f32.mrb[0].mxu0
        %v1134 = vadd.f32 %v1091, %v1133
        %v1135 = vpop.f32.mrb[0].mxu0
        %v1136 = vadd.f32 %v1093, %v1135
        %v1137 = vpop.f32.mrb[0].mxu0
        %v1138 = vadd.f32 %v1095, %v1137
        %v1139 = vpop.f32.mrb[0].mxu0
        %v1140 = vadd.f32 %v1097, %v1139
        %1141 = vdwg.mxu0
        %v1142 = vmax.f32 %v1134, 0.0
        %v1143 = vmax.f32 %v1136, 0.0
        %v1144 = vmax.f32 %v1138, 0.0
        %v1145 = vmax.f32 %v1140, 0.0
        %v1146 = vpack.c.bf16 %v1144, %v1142
        %v1147 = vpack.c.bf16 %v1145, %v1143
        %v1148 = vld [vmem:[#allocation7] sm:$0xff]
        %v1149 = vld [vmem:[#allocation7 + $0x8] sm:$0xff]
        %v1150 = vld [vmem:[#allocation7 + $0x10] sm:$0xff]
        %v1151 = vld [vmem:[#allocation7 + $0x18] sm:$0xff]
        %v1152 = vld [vmem:[#allocation7 + $0x20] sm:$0xff]
        %v1153 = vld [vmem:[#allocation7 + $0x28] sm:$0xff]
        %v1154 = vld [vmem:[#allocation7 + $0x30] sm:$0xff]
        %v1155 = vld [vmem:[#allocation7 + $0x38] sm:$0xff]
        %v1156 = vld [vmem:[#allocation7 + $0x40] sm:$0xff]
        %v1157 = vld [vmem:[#allocation7 + $0x48] sm:$0xff]
        %v1158 = vld [vmem:[#allocation7 + $0x50] sm:$0xff]
        %v1159 = vld [vmem:[#allocation7 + $0x58] sm:$0xff]
        %v1160 = vld [vmem:[#allocation7 + $0x60] sm:$0xff]
        %v1161 = vld [vmem:[#allocation7 + $0x68] sm:$0xff]
        %v1162 = vld [vmem:[#allocation7 + $0x70] sm:$0xff]
        %v1163 = vld [vmem:[#allocation7 + $0x78] sm:$0xff]
        %v1164 = vld [vmem:[#allocation7 + $0x80] sm:$0xff]
        %v1165 = vld [vmem:[#allocation7 + $0x88] sm:$0xff]
        %v1166 = vld [vmem:[#allocation7 + $0x90] sm:$0xff]
        %v1167 = vld [vmem:[#allocation7 + $0x98] sm:$0xff]
        %v1168 = vld [vmem:[#allocation7 + $0xa0] sm:$0xff]
        %v1169 = vld [vmem:[#allocation7 + $0xa8] sm:$0xff]
        %v1170 = vld [vmem:[#allocation7 + $0xb0] sm:$0xff]
        %v1171 = vld [vmem:[#allocation7 + $0xb8] sm:$0xff]
        %v1172 = vld [vmem:[#allocation7 + $0xc0] sm:$0xff]
        %v1173 = vld [vmem:[#allocation7 + $0xc8] sm:$0xff]
        %v1174 = vld [vmem:[#allocation7 + $0xd0] sm:$0xff]
        %v1175 = vld [vmem:[#allocation7 + $0xd8] sm:$0xff]
        %v1176 = vld [vmem:[#allocation7 + $0xe0] sm:$0xff]
        %v1177 = vld [vmem:[#allocation7 + $0xe8] sm:$0xff]
        %v1178 = vld [vmem:[#allocation7 + $0xf0] sm:$0xff]
        %v1179 = vld [vmem:[#allocation7 + $0xf8] sm:$0xff]
        %v1180 = vld [vmem:[%s4] sm:$0x3]
        %v1182 = vlaneseq
        %v1183 = vshrl.u32 %v1182, 7
        %v1184 = vsub.s32 0, %v1183
        %v1185 = vrot.slane %v1180, %v1184
        %v1186 = vlaneseq
        %v1187 = vshrl.u32 %v1186, 7
        %v1188 = vsub.s32 1, %v1187
        %v1189 = vrot.slane %v1180, %v1188
        %v1224 = vunpack.c.l.b16 %v1148
        %v1225 = vunpack.c.h.b16 %v1148
        %v1226 = vunpack.c.l.b16 %v1149
        %v1227 = vunpack.c.h.b16 %v1149
        %v1228 = vunpack.c.l.b16 %v1150
        %v1229 = vunpack.c.h.b16 %v1150
        %v1230 = vunpack.c.l.b16 %v1151
        %v1231 = vunpack.c.h.b16 %v1151
        %v1232 = vunpack.c.l.b16 %v1152
        %v1233 = vunpack.c.h.b16 %v1152
        %v1234 = vunpack.c.l.b16 %v1153
        %v1235 = vunpack.c.h.b16 %v1153
        %v1236 = vunpack.c.l.b16 %v1154
        %v1237 = vunpack.c.h.b16 %v1154
        %v1238 = vunpack.c.l.b16 %v1155
        %v1239 = vunpack.c.h.b16 %v1155
        %v1240 = vunpack.c.l.b16 %v1156
        %v1241 = vunpack.c.h.b16 %v1156
        %v1242 = vunpack.c.l.b16 %v1157
        %v1243 = vunpack.c.h.b16 %v1157
        %v1244 = vunpack.c.l.b16 %v1158
        %v1245 = vunpack.c.h.b16 %v1158
        %v1246 = vunpack.c.l.b16 %v1159
        %v1247 = vunpack.c.h.b16 %v1159
        %v1248 = vunpack.c.l.b16 %v1160
        %v1249 = vunpack.c.h.b16 %v1160
        %v1250 = vunpack.c.l.b16 %v1161
        %v1251 = vunpack.c.h.b16 %v1161
        %v1252 = vunpack.c.l.b16 %v1162
        %v1253 = vunpack.c.h.b16 %v1162
        %v1254 = vunpack.c.l.b16 %v1163
        %v1255 = vunpack.c.h.b16 %v1163
        %v1256 = vunpack.c.l.b16 %v1164
        %v1257 = vunpack.c.h.b16 %v1164
        %v1258 = vunpack.c.l.b16 %v1165
        %v1259 = vunpack.c.h.b16 %v1165
        %v1260 = vunpack.c.l.b16 %v1166
        %v1261 = vunpack.c.h.b16 %v1166
        %v1262 = vunpack.c.l.b16 %v1167
        %v1263 = vunpack.c.h.b16 %v1167
        %v1264 = vunpack.c.l.b16 %v1168
        %v1265 = vunpack.c.h.b16 %v1168
        %v1266 = vunpack.c.l.b16 %v1169
        %v1267 = vunpack.c.h.b16 %v1169
        %v1268 = vunpack.c.l.b16 %v1170
        %v1269 = vunpack.c.h.b16 %v1170
        %v1270 = vunpack.c.l.b16 %v1171
        %v1271 = vunpack.c.h.b16 %v1171
        %v1272 = vunpack.c.l.b16 %v1172
        %v1273 = vunpack.c.h.b16 %v1172
        %v1274 = vunpack.c.l.b16 %v1173
        %v1275 = vunpack.c.h.b16 %v1173
        %v1276 = vunpack.c.l.b16 %v1174
        %v1277 = vunpack.c.h.b16 %v1174
        %v1278 = vunpack.c.l.b16 %v1175
        %v1279 = vunpack.c.h.b16 %v1175
        %v1280 = vunpack.c.l.b16 %v1176
        %v1281 = vunpack.c.h.b16 %v1176
        %v1282 = vunpack.c.l.b16 %v1177
        %v1283 = vunpack.c.h.b16 %v1177
        %v1284 = vunpack.c.l.b16 %v1178
        %v1285 = vunpack.c.h.b16 %v1178
        %v1286 = vunpack.c.l.b16 %v1179
        %v1287 = vunpack.c.h.b16 %v1179
        %v1288 = vpack.c.b16 %v1226, %v1224
        %v1289 = vpack.c.b16 %v1227, %v1225
        %v1290 = vpack.c.b16 %v1230, %v1228
        %v1291 = vpack.c.b16 %v1231, %v1229
        %v1292 = vpack.c.b16 %v1234, %v1232
        %v1293 = vpack.c.b16 %v1235, %v1233
        %v1294 = vpack.c.b16 %v1238, %v1236
        %v1295 = vpack.c.b16 %v1239, %v1237
        %v1296 = vpack.c.b16 %v1242, %v1240
        %v1297 = vpack.c.b16 %v1243, %v1241
        %v1298 = vpack.c.b16 %v1246, %v1244
        %v1299 = vpack.c.b16 %v1247, %v1245
        %v1300 = vpack.c.b16 %v1250, %v1248
        %v1301 = vpack.c.b16 %v1251, %v1249
        %v1302 = vpack.c.b16 %v1254, %v1252
        %v1303 = vpack.c.b16 %v1255, %v1253
        %v1304 = vpack.c.b16 %v1258, %v1256
        %v1305 = vpack.c.b16 %v1259, %v1257
        %v1306 = vpack.c.b16 %v1262, %v1260
        %v1307 = vpack.c.b16 %v1263, %v1261
        %v1308 = vpack.c.b16 %v1266, %v1264
        %v1309 = vpack.c.b16 %v1267, %v1265
        %v1310 = vpack.c.b16 %v1270, %v1268
        %v1311 = vpack.c.b16 %v1271, %v1269
        %v1312 = vpack.c.b16 %v1274, %v1272
        %v1313 = vpack.c.b16 %v1275, %v1273
        %v1314 = vpack.c.b16 %v1278, %v1276
        %v1315 = vpack.c.b16 %v1279, %v1277
        %v1316 = vpack.c.b16 %v1282, %v1280
        %v1317 = vpack.c.b16 %v1283, %v1281
        %v1318 = vpack.c.b16 %v1286, %v1284
        %v1319 = vpack.c.b16 %v1287, %v1285
        %1352 = vmatprep.subr.bf16.mxu0 %v1289
        %1353 = vmatpush1.bf16.msra.mxu0 %v1288
        %1354 = vmatprep.subr.bf16.mxu0 %v1291
        %1355 = vmatpush1.bf16.msra.mxu0 %v1290
        %1356 = vmatprep.subr.bf16.mxu0 %v1293
        %1357 = vmatpush1.bf16.msra.mxu0 %v1292
        %1358 = vmatprep.subr.bf16.mxu0 %v1295
        %1359 = vmatpush1.bf16.msra.mxu0 %v1294
        %1360 = vmatprep.subr.bf16.mxu0 %v1297
        %1361 = vmatpush1.bf16.msra.mxu0 %v1296
        %1362 = vmatprep.subr.bf16.mxu0 %v1299
        %1363 = vmatpush1.bf16.msra.mxu0 %v1298
        %1364 = vmatprep.subr.bf16.mxu0 %v1301
        %1365 = vmatpush1.bf16.msra.mxu0 %v1300
        %1366 = vmatprep.subr.bf16.mxu0 %v1303
        %1367 = vmatpush1.bf16.msra.mxu0 %v1302
        %1368 = vmatprep.subr.bf16.mxu0 %v1305
        %1369 = vmatpush1.bf16.msra.mxu0 %v1304
        %1370 = vmatprep.subr.bf16.mxu0 %v1307
        %1371 = vmatpush1.bf16.msra.mxu0 %v1306
        %1372 = vmatprep.subr.bf16.mxu0 %v1309
        %1373 = vmatpush1.bf16.msra.mxu0 %v1308
        %1374 = vmatprep.subr.bf16.mxu0 %v1311
        %1375 = vmatpush1.bf16.msra.mxu0 %v1310
        %1376 = vmatprep.subr.bf16.mxu0 %v1313
        %1377 = vmatpush1.bf16.msra.mxu0 %v1312
        %1378 = vmatprep.subr.bf16.mxu0 %v1315
        %1379 = vmatpush1.bf16.msra.mxu0 %v1314
        %1380 = vmatprep.subr.bf16.mxu0 %v1317
        %1381 = vmatpush1.bf16.msra.mxu0 %v1316
        %1382 = vmatprep.subr.bf16.mxu0 %v1319
        %1383 = vmatpush1.bf16.msra.mxu0 %v1318
        %1384 = vmatprep.mubr.bf16.mxu0 %v1147
        %1385 = vmatmul.mubr.bf16.gmra.mrb[0].mxu0 %v1146
        %v1386 = vpop.f32.mrb[0].mxu0
        %v1387 = vadd.f32 %v1185, %v1386
        %v1388 = vpop.f32.mrb[0].mxu0
        %v1389 = vadd.f32 %v1189, %v1388
        %v1390 = vpop.f32.mrb[0].mxu0
        %v1391 = vadd.f32 %v1185, %v1390
        %v1392 = vpop.f32.mrb[0].mxu0
        %v1393 = vadd.f32 %v1189, %v1392
        %1394 = vdwg.mxu0
        %v1395 = vmax.f32 %v1387, 0.0
        %v1396 = vmax.f32 %v1389, 0.0
        %v1397 = vmax.f32 %v1391, 0.0
        %v1398 = vmax.f32 %v1393, 0.0
        %v1399 = vpack.c.bf16 %v1397, %v1395
        %v1400 = vpack.c.bf16 %v1398, %v1396
        %v1401 = vld [vmem:[#allocation8] sm:$0xf]
        %v1402 = vld [vmem:[#allocation8 + $0x4] sm:$0xf]
        %v1403 = vld [vmem:[#allocation8 + $0x8] sm:$0xf]
        %v1404 = vld [vmem:[#allocation8 + $0xc] sm:$0xf]
        %v1405 = vld [vmem:[#allocation8 + $0x10] sm:$0xf]
        %v1406 = vld [vmem:[#allocation8 + $0x14] sm:$0xf]
        %v1407 = vld [vmem:[#allocation8 + $0x18] sm:$0xf]
        %v1408 = vld [vmem:[#allocation8 + $0x1c] sm:$0xf]
        %v1409 = vld [vmem:[#allocation8 + $0x20] sm:$0xf]
        %v1410 = vld [vmem:[#allocation8 + $0x24] sm:$0xf]
        %v1411 = vld [vmem:[#allocation8 + $0x28] sm:$0xf]
        %v1412 = vld [vmem:[#allocation8 + $0x2c] sm:$0xf]
        %v1413 = vld [vmem:[#allocation8 + $0x30] sm:$0xf]
        %v1414 = vld [vmem:[#allocation8 + $0x34] sm:$0xf]
        %v1415 = vld [vmem:[#allocation8 + $0x38] sm:$0xf]
        %v1416 = vld [vmem:[#allocation8 + $0x3c] sm:$0xf]
        %v1417 = vld [vmem:[#allocation8 + $0x40] sm:$0xf]
        %v1418 = vld [vmem:[#allocation8 + $0x44] sm:$0xf]
        %v1419 = vld [vmem:[#allocation8 + $0x48] sm:$0xf]
        %v1420 = vld [vmem:[#allocation8 + $0x4c] sm:$0xf]
        %v1421 = vld [vmem:[#allocation8 + $0x50] sm:$0xf]
        %v1422 = vld [vmem:[#allocation8 + $0x54] sm:$0xf]
        %v1423 = vld [vmem:[#allocation8 + $0x58] sm:$0xf]
        %v1424 = vld [vmem:[#allocation8 + $0x5c] sm:$0xf]
        %v1425 = vld [vmem:[#allocation8 + $0x60] sm:$0xf]
        %v1426 = vld [vmem:[#allocation8 + $0x64] sm:$0xf]
        %v1427 = vld [vmem:[#allocation8 + $0x68] sm:$0xf]
        %v1428 = vld [vmem:[#allocation8 + $0x6c] sm:$0xf]
        %v1429 = vld [vmem:[#allocation8 + $0x70] sm:$0xf]
        %v1430 = vld [vmem:[#allocation8 + $0x74] sm:$0xf]
        %v1431 = vld [vmem:[#allocation8 + $0x78] sm:$0xf]
        %v1432 = vld [vmem:[#allocation8 + $0x7c] sm:$0xf]
        %v1433 = vld [vmem:[%s6] sm:$0x1]
        %v1435 = vlaneseq
        %v1436 = vshrl.u32 %v1435, 7
        %v1437 = vsub.s32 0, %v1436
        %v1438 = vrot.slane %v1433, %v1437
        %v1472 = vunpack.c.l.b16 %v1401
        %v1473 = vunpack.c.l.b16 %v1402
        %v1474 = vunpack.c.l.b16 %v1403
        %v1475 = vunpack.c.l.b16 %v1404
        %v1476 = vunpack.c.l.b16 %v1405
        %v1477 = vunpack.c.l.b16 %v1406
        %v1478 = vunpack.c.l.b16 %v1407
        %v1479 = vunpack.c.l.b16 %v1408
        %v1480 = vunpack.c.l.b16 %v1409
        %v1481 = vunpack.c.l.b16 %v1410
        %v1482 = vunpack.c.l.b16 %v1411
        %v1483 = vunpack.c.l.b16 %v1412
        %v1484 = vunpack.c.l.b16 %v1413
        %v1485 = vunpack.c.l.b16 %v1414
        %v1486 = vunpack.c.l.b16 %v1415
        %v1487 = vunpack.c.l.b16 %v1416
        %v1488 = vunpack.c.l.b16 %v1417
        %v1489 = vunpack.c.l.b16 %v1418
        %v1490 = vunpack.c.l.b16 %v1419
        %v1491 = vunpack.c.l.b16 %v1420
        %v1492 = vunpack.c.l.b16 %v1421
        %v1493 = vunpack.c.l.b16 %v1422
        %v1494 = vunpack.c.l.b16 %v1423
        %v1495 = vunpack.c.l.b16 %v1424
        %v1496 = vunpack.c.l.b16 %v1425
        %v1497 = vunpack.c.l.b16 %v1426
        %v1498 = vunpack.c.l.b16 %v1427
        %v1499 = vunpack.c.l.b16 %v1428
        %v1500 = vunpack.c.l.b16 %v1429
        %v1501 = vunpack.c.l.b16 %v1430
        %v1502 = vunpack.c.l.b16 %v1431
        %v1503 = vunpack.c.l.b16 %v1432
        %v1504 = vpack.c.b16 %v1473, %v1472
        %v1505 = vpack.c.b16 %v1475, %v1474
        %v1506 = vpack.c.b16 %v1477, %v1476
        %v1507 = vpack.c.b16 %v1479, %v1478
        %v1508 = vpack.c.b16 %v1481, %v1480
        %v1509 = vpack.c.b16 %v1483, %v1482
        %v1510 = vpack.c.b16 %v1485, %v1484
        %v1511 = vpack.c.b16 %v1487, %v1486
        %v1512 = vpack.c.b16 %v1489, %v1488
        %v1513 = vpack.c.b16 %v1491, %v1490
        %v1514 = vpack.c.b16 %v1493, %v1492
        %v1515 = vpack.c.b16 %v1495, %v1494
        %v1516 = vpack.c.b16 %v1497, %v1496
        %v1517 = vpack.c.b16 %v1499, %v1498
        %v1518 = vpack.c.b16 %v1501, %v1500
        %v1519 = vpack.c.b16 %v1503, %v1502
        %1536 = vmatprep.subr.bf16.mxu0 0
        %1537 = vmatpush1.bf16.msra.mxu0 %v1504
        %1538 = vmatprep.subr.bf16.mxu0 0
        %1539 = vmatpush1.bf16.msra.mxu0 %v1505
        %1540 = vmatprep.subr.bf16.mxu0 0
        %1541 = vmatpush1.bf16.msra.mxu0 %v1506
        %1542 = vmatprep.subr.bf16.mxu0 0
        %1543 = vmatpush1.bf16.msra.mxu0 %v1507
        %1544 = vmatprep.subr.bf16.mxu0 0
        %1545 = vmatpush1.bf16.msra.mxu0 %v1508
        %1546 = vmatprep.subr.bf16.mxu0 0
        %1547 = vmatpush1.bf16.msra.mxu0 %v1509
        %1548 = vmatprep.subr.bf16.mxu0 0
        %1549 = vmatpush1.bf16.msra.mxu0 %v1510
        %1550 = vmatprep.subr.bf16.mxu0 0
        %1551 = vmatpush1.bf16.msra.mxu0 %v1511
        %1552 = vmatprep.subr.bf16.mxu0 0
        %1553 = vmatpush1.bf16.msra.mxu0 %v1512
        %1554 = vmatprep.subr.bf16.mxu0 0
        %1555 = vmatpush1.bf16.msra.mxu0 %v1513
        %1556 = vmatprep.subr.bf16.mxu0 0
        %1557 = vmatpush1.bf16.msra.mxu0 %v1514
        %1558 = vmatprep.subr.bf16.mxu0 0
        %1559 = vmatpush1.bf16.msra.mxu0 %v1515
        %1560 = vmatprep.subr.bf16.mxu0 0
        %1561 = vmatpush1.bf16.msra.mxu0 %v1516
        %1562 = vmatprep.subr.bf16.mxu0 0
        %1563 = vmatpush1.bf16.msra.mxu0 %v1517
        %1564 = vmatprep.subr.bf16.mxu0 0
        %1565 = vmatpush1.bf16.msra.mxu0 %v1518
        %1566 = vmatprep.subr.bf16.mxu0 0
        %1567 = vmatpush1.bf16.msra.mxu0 %v1519
        %1568 = vmatprep.mubr.bf16.mxu0 %v1400
        %1569 = vmatmul.mubr.bf16.gmra.mrb[0].mxu0 %v1399
        %v1570 = vpop.f32.mrb[0].mxu0
        %v1571 = vadd.f32 %v1438, %v1570
        %v1572 = vpop.f32.mrb[0].mxu0
        %v1573 = vpop.f32.mrb[0].mxu0
        %v1574 = vadd.f32 %v1438, %v1573
        %v1575 = vpop.f32.mrb[0].mxu0
        %1576 = vdwg.mxu0
        %1577 = vmax.xlane.f32.xlu0 %v1571
        %v1578 = vpop.xlane.xlu0 %1577
        %1579 = vmax.xlane.f32.xlu0 %v1574
        %v1580 = vpop.xlane.xlu0 %1579
        %v1581 = vsub.f32 %v1571, %v1578
        %v1582 = vsub.f32 %v1574, %v1580
        %v1583 = vmul.f32 %v1581, 1.442695
        %v1584 = vpow.pop %v1583
        %v1585 = vmul.f32 %v1582, 1.442695
        %v1586 = vpow.pop %v1585
        %1587 = vadd.xlane.f32.xlu0 %v1584
        %v1588 = vpop.xlane.xlu0 %1587
        %1589 = vadd.xlane.f32.xlu0 %v1586
        %v1590 = vpop.xlane.xlu0 %1589
        %v1591 = vlog2.pop %v1588
        %v1592 = vmul.f32 %v1591, 0.6931472
        %v1593 = vlog2.pop %v1590
        %v1594 = vmul.f32 %v1593, 0.6931472
        %v1595 = vsub.f32 %v1581, %v1592
        %v1596 = vsub.f32 %v1582, %v1594
        %v1597 = vpack.c.bf16 %v1596, %v1595
        %v1599 = vunpack.c.l.b16 %v1597
        %v1600 = vunpack.c.h.b16 %v1597
        %v1601 = vpack.c.b16 %v1599, %v1599
        %v1602 = vpack.c.b16 %v1600, %v1600
        %1605 = vst [vmem:[%s341] sm:$0xf] %v1601
        %1606 = vst [vmem:[%s341 + $0x4] sm:$0xf] %v1602
        %s1607 = sand.u32 %s186, 1
        %s1608 = scalar_lea.sflag [#allocation4], %s1607
        %s1609 = sand.u32 %s186, 1
        %s1610 = smul.addr %s1609, 8
        %s1611 = scalar_lea.vmem [#allocation10], %s1610
        // Predicated region
        $region65: #{tpu_custom_call.1} parent=47 // pred_check
          %p1612 = pneg %p196
        $region66: #{tpu_custom_call.1} parent=47 // pred_check_branch
          %1614 = sbr.rel (%p1612) target = $region68
        $region67: #{tpu_custom_call.1} parent=47 // pred_region
          %s1615 = smul.u32 2, %s26
          %s1617 = ssub.s32 128, 128
          %1618 = vsyncadd %s1608, %s1617
          %s1619 = smul.addr %s1615, 64
          %s1620 = scalar_lea.hbm %s7, %s1619
          %s1621 = sshll.u32 %s1611, 4
          %s1622 = int_to_ptr.vmem [resolvable:$true] %s1621
          %1627 = dma.vmem_to_hbm [thread:$0]  %s1622, 128, %s1620, %s1608, 64, 64, 4
        $region68: #{tpu_custom_call.1} parent=47 // pred_fallthru
          _
      $region48: #{tpu_custom_call.1} parent=5 // pred_fallthru
        _
      %p1628 = scmp.le.s32.totalorder 2, %s21
      // Predicated region
      $region69: #{tpu_custom_call.1} parent=5 // pred_check
        %p1629 = pneg %p1628
      $region70: #{tpu_custom_call.1} parent=5 // pred_check_branch
        %1631 = sbr.rel (%p1629) target = $region72
      $region71: #{tpu_custom_call.1} parent=5 // pred_region
        %s1632 = ssub.s32 %s21, 2
        // Predicated region
        $region73: #{tpu_custom_call.1} parent=71 // pred_check
          %p1633 = pneg %p202
        $region74: #{tpu_custom_call.1} parent=71 // pred_check_branch
          %1635 = sbr.rel (%p1633) target = $region76
        $region75: #{tpu_custom_call.1} parent=71 // pred_region
          %s1636 = sand.u32 %s187, 1
          %s1637 = scalar_lea.sflag [#allocation4], %s1636
          %s1638 = sand.u32 %s187, 1
          %s1639 = smul.addr %s1638, 8
          %s1640 = scalar_lea.vmem [#allocation10], %s1639
          %1641 = dma.done %s1637, 128
        $region76: #{tpu_custom_call.1} parent=71 // pred_fallthru
          _
      $region72: #{tpu_custom_call.1} parent=5 // pred_fallthru
        _
    $region6: #{tpu_custom_call.1} parent=1 // loop_footer
      %s25 = sadd.s32 1, %s21
    $region7: #{tpu_custom_call.1} parent=1 // loop_footer_branch
      %20 = sbr.rel target = $region3
    $region8: #{tpu_custom_call.1} parent=1 // loop_exit
      _
    %1642 = vsyncpa [#allocation3], 1
    %s1643 = scalar_lea.sflag [#allocation3], 1
    %1644 = vsyncpa %s1643, 1
    %1645 = vsyncpa [#allocation6], 1
    %1646 = vsyncpa [#allocation9], 1
    %1647 = vsyncpa [#allocation4], 1
    %s1648 = scalar_lea.sflag [#allocation4], 1
    %1649 = vsyncpa %s1648, 1

</llo_original>
